<compile_context>
chip_gen: v7x
topology: tpu7x:2x2x1
jax: 0.10.0
libtpu: 0.0.40
codegen_flags: <defaults>
</compile_context>

<pallas_src>
import math
import functools

import jax
import jax.numpy as jnp
from jax.experimental import pallas as pl
from jax.experimental.pallas import tpu as pltpu
from jax.scipy.linalg import block_diag

BN_EPS = 1e-5


def _round_up(x, m):
    return ((x + m - 1) // m) * m


# ------------------------------- raw parameter init (torch-equivalent) --------

def _linear_init(key, din, dout):
    k1, k2 = jax.random.split(key)
    bound = 1.0 / math.sqrt(din)
    w = jax.random.uniform(k1, (din, dout), jnp.float32, -bound, bound)
    b = jax.random.uniform(k2, (dout,), jnp.float32, -bound, bound)
    return w, b


def _init_mlp(key, input_dim, embed_dims, output_layer):
    layers = []
    keys = jax.random.split(key, len(embed_dims) + 1)
    din = input_dim
    for i, d in enumerate(embed_dims):
        w, b = _linear_init(keys[i], din, d)
        layers.append(dict(
            w=w, b=b,
            gamma=jnp.ones((d,), jnp.float32),
            beta=jnp.zeros((d,), jnp.float32),
            mean=jnp.zeros((d,), jnp.float32),
            var=jnp.ones((d,), jnp.float32),
        ))
        din = d
    out = None
    if output_layer:
        w, b = _linear_init(keys[-1], din, 1)
        out = dict(w=w, b=b)
    return dict(layers=layers, out=out)


def init_params(key, cfg):
    field_dims = cfg["categorical_field_dims"]
    E = cfg["embed_dim"]
    keys = jax.random.split(key, 8)

    num_rows = sum(field_dims)
    xav = math.sqrt(6.0 / (num_rows + E))
    params = {
        "embedding": jax.random.uniform(keys[0], (num_rows, E), jnp.float32, -xav, xav),
    }
    offsets = [0]
    for d in field_dims[:-1]:
        offsets.append(offsets[-1] + d)
    params["offsets"] = jnp.array(offsets, dtype=jnp.int32)

    params["num_w"], params["num_b"] = _linear_init(keys[1], cfg["numerical_num"], E)
    params["task_embedding"] = jax.random.normal(keys[2], (cfg["task_num"], E), jnp.float32)

    embed_output_dim = (len(field_dims) + 1) * E
    ekeys = jax.random.split(keys[3], cfg["expert_num"])
    params["experts"] = [
        _init_mlp(ekeys[e], embed_output_dim, cfg["bottom_mlp_dims"], output_layer=False)
        for e in range(cfg["expert_num"])
    ]
    ckeys = jax.random.split(keys[4], cfg["critic_num"])
    params["critics"] = [
        _init_mlp(ckeys[c], cfg["bottom_mlp_dims"][-1], cfg["tower_mlp_dims"], output_layer=True)
        for c in range(cfg["critic_num"])
    ]
    params["eg_w"], params["eg_b"] = _linear_init(keys[5], 2 * E, cfg["expert_num"])
    params["cg_w"], params["cg_b"] = _linear_init(keys[6], 2 * E, cfg["critic_num"])
    return params


# --------------------- fold BN / batch experts & critics / pack slabs ---------

def _fold_bn(layer):
    scale = layer["gamma"] * jax.lax.rsqrt(layer["var"] + BN_EPS)
    w = layer["w"] * scale[None, :]
    b = (layer["b"] - layer["mean"]) * scale + layer["beta"]
    return w, b


def fuse_params(params, cfg):
    E = cfg["embed_dim"]
    T = cfg["task_num"]
    En, Cn = cfg["expert_num"], cfg["critic_num"]
    nB = len(cfg["bottom_mlp_dims"])
    nT = len(cfg["tower_mlp_dims"])
    numF = cfg["numerical_num"]
    numF_pad = _round_up(numF, 8)

    # Experts: layer 0 -> concat along outputs; deeper layers -> block-diag.
    # TODO(synk): at production expert counts replace block-diag layers with per-expert dots.
    expert_ws, expert_bs = [], []
    for l in range(nB):
        ws, bs = [], []
        for e in range(En):
            w, b = _fold_bn(params["experts"][e]["layers"][l])
            ws.append(w)
            bs.append(b)
        expert_ws.append(jnp.concatenate(ws, axis=1) if l == 0 else block_diag(*ws))
        expert_bs.append(jnp.concatenate(bs, axis=0))

    # Critics: tower layers (BN folded) then the per-critic output Linear(., 1).
    critic_ws, critic_bs = [], []
    for l in range(nT):
        ws, bs = [], []
        for c in range(Cn):
            w, b = _fold_bn(params["critics"][c]["layers"][l])
            ws.append(w)
            bs.append(b)
        critic_ws.append(jnp.concatenate(ws, axis=1) if l == 0 else block_diag(*ws))
        critic_bs.append(jnp.concatenate(bs, axis=0))
    critic_out_w = block_diag(*[params["critics"][c]["out"]["w"] for c in range(Cn)])
    critic_out_b = jnp.concatenate([params["critics"][c]["out"]["b"] for c in range(Cn)], axis=0)

    # Gate: expert+critic gates share one projection. The task-embedding half
    # of the projection is hoisted to here (one row per task); only the
    # mean-embedding half stays in the kernel.
    gate_w = jnp.concatenate([params["eg_w"], params["cg_w"]], axis=1)       # (2E, En+Cn)
    gate_b = jnp.concatenate([params["eg_b"], params["cg_b"]], axis=0)       # (En+Cn,)
    task_gate = params["task_embedding"] @ gate_w[:E, :] + gate_b[None, :]   # (T, En+Cn)
    gate_w_mean = gate_w[E:, :]                                              # (E, En+Cn)

    num_w = jnp.zeros((numF_pad, E), jnp.float32).at[:numF, :].set(params["num_w"])

    # ---- pack all weights into ONE bf16, lane-dense slab (16-row aligned) ----
    weights = [("num", num_w), ("gate", gate_w_mean)]
    weights += [(f"exp{l}", expert_ws[l]) for l in range(nB)]
    weights += [(f"crit{l}", critic_ws[l]) for l in range(nT)]
    weights += [("crit_out", critic_out_w)]

    lanes_w = _round_up(max(int(w.shape[1]) for _, w in weights), 128)
    rows_w = sum(_round_up(int(w.shape[0]), 16) for _, w in weights)
    w_slab = jnp.zeros((rows_w, lanes_w), jnp.bfloat16)
    w_meta, row = {}, 0
    flops_per_row = 0
    for name, w in weights:
        K, N = int(w.shape[0]), int(w.shape[1])
        w_slab = w_slab.at[row:row + K, :N].set(w.astype(jnp.bfloat16))
        w_meta[name] = (row, K, N)
        row += _round_up(K, 16)
        flops_per_row += 2 * K * N * (T if name.startswith("crit") else 1)

    # ---- pack every bias vector + per-task gate rows into ONE f32 slab ----
    biases = [("num", params["num_b"])]
    biases += [(f"exp{l}", expert_bs[l]) for l in range(nB)]
    biases += [(f"crit{l}", critic_bs[l]) for l in range(nT)]
    biases += [("crit_out", critic_out_b)]
    biases += [(f"task{i}", task_gate[i]) for i in range(T)]

    lanes_b = _round_up(max(int(b.shape[0]) for _, b in biases), 128)
    rows_b = _round_up(len(biases), 8)
    b_slab = jnp.zeros((rows_b, lanes_b), jnp.float32)
    b_meta = {}
    for r, (name, b) in enumerate(biases):
        n = int(b.shape[0])
        b_slab = b_slab.at[r, :n].set(b)
        b_meta[name] = (r, n)

    fused = dict(
        embedding=params["embedding"].astype(jnp.bfloat16),   # halves gather HBM read
        offsets=params["offsets"],
        w_slab=w_slab,
        b_slab=b_slab,
    )
    meta = dict(
        w_meta=w_meta, b_meta=b_meta, numF_pad=numF_pad,
        flops_per_row=flops_per_row,
        transcendentals_per_row=T * (En + 2 * Cn),
    )
    return fused, meta


# ------------------------------- fused Pallas kernel --------------------------

def _fused_forward_kernel(cat_ref, num_ref, w_ref, b_ref, out_ref, *, cfg, meta):
    E = cfg["embed_dim"]
    T = cfg["task_num"]
    En, Cn = cfg["expert_num"], cfg["critic_num"]
    F = len(cfg["categorical_field_dims"])
    H = cfg["bottom_mlp_dims"][-1]
    nB = len(cfg["bottom_mlp_dims"])
    nT = len(cfg["tower_mlp_dims"])
    w_meta, b_meta = meta["w_meta"], meta["b_meta"]

    def W(name):                       # bf16 (K, N) weight, static ref slice
        r0, K, N = w_meta[name]
        return w_ref[r0:r0 + K, 0:N]

    def Bv(name):                      # f32 (1, n) bias / task-gate row
        r, n = b_meta[name]
        return b_ref[r:r + 1, 0:n]

    cat = cat_ref[...]                                        # (tb, F*E) bf16, lane-dense

    # numerical Linear -> (tb, E) f32
    num_emb = jnp.dot(num_ref[...].astype(jnp.bfloat16), W("num"),
                      preferred_element_type=jnp.float32) + Bv("num")

    # mean over the F categorical fields + numerical embedding (lane slices only)
    cat_f32 = cat.astype(jnp.float32)
    mean_emb = num_emb
    for f in range(F):
        mean_emb = mean_emb + cat_f32[:, f * E:(f + 1) * E]
    mean_emb = mean_emb * (1.0 / float(F + 1))                # (tb, E)

    # gate: mean-embedding half in-kernel, task-embedding half precomputed
    mean_gate = jnp.dot(mean_emb.astype(jnp.bfloat16), W("gate"),
                        preferred_element_type=jnp.float32)   # (tb, En+Cn)

    # experts: one matmul per layer for ALL experts (BN folded, bf16 operands)
    h = jnp.concatenate([cat, num_emb.astype(jnp.bfloat16)], axis=1)   # (tb, (F+1)*E) bf16
    hf = None
    for l in range(nB):
        z = jnp.dot(h, W(f"exp{l}"), preferred_element_type=jnp.float32) + Bv(f"exp{l}")
        hf = jnp.maximum(z, 0.0)                                       # f32
        h = hf.astype(jnp.bfloat16)
    fea = [hf[:, e * H:(e + 1) * H] for e in range(En)]                # En x (tb, H) f32

    def softmax(x):
        x = x - jnp.max(x, axis=-1, keepdims=True)
        e = jnp.exp(x)
        return e * pl.reciprocal(jnp.sum(e, axis=-1, keepdims=True), approx=True)

    outs = []
    for i in range(T):                                        # T is small -> unrolled
        g = mean_gate + Bv(f"task{i}")                        # (tb, En+Cn)
        eg = softmax(g[:, 0:En])                              # (tb, En)
        cg = softmax(g[:, En:En + Cn])                        # (tb, Cn)

        # expert mixing (f32 FMA chain)
        tfea = eg[:, 0:1] * fea[0]
        for e in range(1, En):
            tfea = tfea + eg[:, e:e + 1] * fea[e]             # (tb, H)

        # critics: one matmul per tower layer for ALL critics
        x = tfea.astype(jnp.bfloat16)
        for l in range(nT):
            z = jnp.dot(x, W(f"crit{l}"), preferred_element_type=jnp.float32) + Bv(f"crit{l}")
            x = jnp.maximum(z, 0.0).astype(jnp.bfloat16)
        logits = jnp.dot(x, W("crit_out"),
                         preferred_element_type=jnp.float32) + Bv("crit_out")   # (tb, Cn)

        outs.append(jnp.mean(cg * jax.nn.sigmoid(logits), axis=1, keepdims=True))

    out_ref[...] = jnp.concatenate(outs, axis=1)              # (tb, T) lane-thin store


# ------------------------------- forward wrapper -------------------------------

def _choose_tile(B):
    """Pick (tb, B_pad): grid of >=2 'parallel' programs (v7x megacore) and a
    tile big enough to amortize per-step pipeline overhead at larger B."""
    if B <= 16:
        tb = 8
    elif B <= 1024:
        tb = _round_up((B + 1) // 2, 8)
    else:
        tb = 512
    B_pad = _round_up(B, tb)
    if B_pad // tb < 2:
        B_pad = 2 * tb
    return tb, B_pad


def metaheac_forward(fused, meta, cfg, categorical_x, numerical_x):
    E = cfg["embed_dim"]
    T = cfg["task_num"]
    B, F = categorical_x.shape
    numF_pad = meta["numF_pad"]

    tb, B_pad = _choose_tile(B)
    grid = (B_pad // tb,)

    # pad batch (crop outside) and pad the numerical feature dim to the packed K
    if B_pad != B:
        categorical_x = jnp.pad(categorical_x, ((0, B_pad - B), (0, 0)))
        numerical_x = jnp.pad(numerical_x, ((0, B_pad - B), (0, 0)))
    if numerical_x.shape[1] != numF_pad:
        numerical_x = jnp.pad(numerical_x, ((0, 0), (0, numF_pad - numerical_x.shape[1])))

    # Embedding gather stays in plain JAX (HBM-resident table), emitted as a
    # lane-dense bf16 (B_pad, F*E) slab via a free row-major reshape.
    # TODO(synk): for production-size tables use memory_space=pl.ANY + manual DMA row gather.
    cat_idx = categorical_x + fused["offsets"][None, :]
    cat2d = fused["embedding"][cat_idx].reshape(B_pad, F * E)           # bf16

    w_slab, b_slab = fused["w_slab"], fused["b_slab"]

    in_specs = [
        pl.BlockSpec((tb, F * E), lambda b: (b, 0)),
        pl.BlockSpec((tb, numF_pad), lambda b: (b, 0)),
        pl.BlockSpec(w_slab.shape, lambda b: (0, 0)),
        pl.BlockSpec(b_slab.shape, lambda b: (0, 0)),
    ]
    out_spec = pl.BlockSpec((tb, T), lambda b: (b, 0))

    cost = pl.CostEstimate(
        flops=int(meta["flops_per_row"]) * B_pad,
        transcendentals=int(meta["transcendentals_per_row"]) * B_pad,
        bytes_accessed=int(cat2d.size * 2 + numerical_x.size * 4
                           + w_slab.size * 2 + b_slab.size * 4 + B_pad * T * 4),
    )

    kernel = functools.partial(_fused_forward_kernel, cfg=cfg, meta=meta)
    out = pl.pallas_call(
        kernel,
        out_shape=jax.ShapeDtypeStruct((B_pad, T), jnp.float32),
        grid=grid,
        in_specs=in_specs,
        out_specs=out_spec,
        compiler_params=pltpu.CompilerParams(dimension_semantics=("parallel",)),
        cost_estimate=cost,
    )(cat2d, numerical_x.astype(jnp.float32), w_slab, b_slab)

    return [out[:B, i] for i in range(T)]


# ------------------------------- pure-JAX f32 reference ------------------------

def _mlp_ref(mlp, x, output_layer):
    for layer in mlp["layers"]:
        x = x @ layer["w"] + layer["b"]
        x = (x - layer["mean"]) * (layer["gamma"] * jax.lax.rsqrt(layer["var"] + BN_EPS)) + layer["beta"]
        x = jnp.maximum(x, 0.0)
    if output_layer:
        x = x @ mlp["out"]["w"] + mlp["out"]["b"]
    return x


def reference_forward(params, cfg, categorical_x, numerical_x):
    E = cfg["embed_dim"]
    T = cfg["task_num"]
    En, Cn = cfg["expert_num"], cfg["critic_num"]
    B = categorical_x.shape[0]
    cat_emb = params["embedding"][categorical_x + params["offsets"][None, :]]   # (B,F,E)
    num_emb = numerical_x @ params["num_w"] + params["num_b"]                   # (B,E)
    emb = jnp.concatenate([cat_emb, num_emb[:, None, :]], axis=1)               # (B,F+1,E)
    mean_emb = jnp.mean(emb, axis=1)
    emb_flat = emb.reshape(B, -1)
    fea = jnp.stack([_mlp_ref(params["experts"][e], emb_flat, False) for e in range(En)], axis=1)
    results = []
    for i in range(T):
        gin = jnp.concatenate(
            [jnp.broadcast_to(params["task_embedding"][i][None, :], (B, E)), mean_emb], axis=1)
        eg = jax.nn.softmax(gin @ params["eg_w"] + params["eg_b"], axis=-1)
        cg = jax.nn.softmax(gin @ params["cg_w"] + params["cg_b"], axis=-1)
        task_fea = jnp.einsum("be,beh->bh", eg, fea)
        logits = jnp.concatenate(
            [_mlp_ref(params["critics"][c], task_fea, True) for c in range(Cn)], axis=1)
        results.append(jnp.mean(cg * jax.nn.sigmoid(logits), axis=1))
    return results


# ------------------------------- main -------------------------------

if __name__ == "__main__":
    cfg = dict(
        categorical_field_dims=(10, 20, 30),
        numerical_num=5,
        embed_dim=16,
        bottom_mlp_dims=(32, 16),
        tower_mlp_dims=(16, 8),
        task_num=2,
        expert_num=3,
        critic_num=2,
        dropout=0.2,  # TODO(synk): training-mode dropout / batch-stat BN not modeled (eval semantics)
    )
    B = 8

    key = jax.random.PRNGKey(0)
    pkey, dkey = jax.random.split(key)
    raw_params = init_params(pkey, cfg)
    fused_params, meta = fuse_params(raw_params, cfg)

    fkeys = jax.random.split(dkey, len(cfg["categorical_field_dims"]) + 1)
    cat_cols = [
        jax.random.randint(fkeys[f], (B, 1), 0, cfg["categorical_field_dims"][f], dtype=jnp.int32)
        for f in range(len(cfg["categorical_field_dims"]))
    ]
    categorical_x = jnp.concatenate(cat_cols, axis=1)               # (B, 3) int32
    numerical_x = jax.random.normal(fkeys[-1], (B, cfg["numerical_num"]), jnp.float32)

    results = metaheac_forward(fused_params, meta, cfg, categorical_x, numerical_x)
    results = jax.block_until_ready(results)
    assert len(results) == cfg["task_num"]
    assert all(r.shape == (B,) for r in results)
    assert all(bool(jnp.all(jnp.isfinite(r))) for r in results)

    # Loose tolerance: kernel uses bf16 matmul operands + approx softmax reciprocal.
    ref = reference_forward(raw_params, cfg, categorical_x, numerical_x)
    max_err = max(float(jnp.max(jnp.abs(r - rr))) for r, rr in zip(results, ref))
    assert max_err < 6e-2, f"mismatch vs f32 reference: {max_err}"

    print("KERNEL_OK")
</pallas_src>

<mosaic_0001>
module attributes {stable_mosaic.version = 11 : i64} {
  func.func @_fused_forward_kernel(%arg0: i32, %arg1: memref<8x48xbf16, #tpu.memory_space<vmem>>, %arg2: memref<8x8xf32, #tpu.memory_space<vmem>>, %arg3: memref<256x128xbf16, #tpu.memory_space<vmem>>, %arg4: memref<8x128xf32, #tpu.memory_space<vmem>>, %arg5: memref<8x2xf32, #tpu.memory_space<vmem>>) attributes {dimension_semantics = [#tpu.dimension_semantics<parallel>], iteration_bounds = array<i64: 2>, scalar_prefetch = 0 : i64, scratch_operands = 0 : i64, tpu.core_type = #tpu.core_type<tc>, window_params = [{transform_indices = @transform_0, window_bounds = array<i64: 8, 48>}, {transform_indices = @transform_1, window_bounds = array<i64: 8, 8>}, {pipeline_mode = #tpu.pipeline_mode<synchronous>, transform_indices = @transform_2, window_bounds = array<i64: 256, 128>}, {pipeline_mode = #tpu.pipeline_mode<synchronous>, transform_indices = @transform_3, window_bounds = array<i64: 8, 128>}, {transform_indices = @transform_4, window_bounds = array<i64: 8, 2>}]} {
    %c0 = arith.constant 0 : index
    %c0_0 = arith.constant 0 : index
    %0 = vector.load %arg1[%c0, %c0_0] : memref<8x48xbf16, #tpu.memory_space<vmem>>, vector<8x48xbf16>
    %c0_1 = arith.constant 0 : index
    %c0_2 = arith.constant 0 : index
    %1 = vector.load %arg2[%c0_1, %c0_2] : memref<8x8xf32, #tpu.memory_space<vmem>>, vector<8x8xf32>
    %2 = arith.truncf %1 : vector<8x8xf32> to vector<8x8xbf16>
    %c0_3 = arith.constant 0 : index
    %c0_4 = arith.constant 0 : index
    %3 = vector.load %arg3[%c0_3, %c0_4] : memref<256x128xbf16, #tpu.memory_space<vmem>>, vector<8x16xbf16>
    %cst = arith.constant dense<0.000000e+00> : vector<8x16xf32>
    %4 = tpu.matmul %2, %3, %cst {dimension_numbers = #tpu.dot_dimension_numbers<[1], [0], [0], [1], [0, 0, 1, 1], [], []>} : vector<8x8xbf16>, vector<8x16xbf16>, vector<8x16xf32> -> vector<8x16xf32>
    %c0_5 = arith.constant 0 : index
    %c0_6 = arith.constant 0 : index
    %5 = vector.load %arg4[%c0_5, %c0_6] : memref<8x128xf32, #tpu.memory_space<vmem>>, vector<1x16xf32>
    %6 = vector.broadcast %5 : vector<1x16xf32> to vector<8x16xf32>
    %7 = arith.addf %4, %6 : vector<8x16xf32>
    %8 = arith.extf %0 : vector<8x48xbf16> to vector<8x48xf32>
    %9 = vector.extract_strided_slice %8 {offsets = [0, 0], sizes = [8, 16], strides = [1, 1]} : vector<8x48xf32> to vector<8x16xf32>
    %10 = arith.addf %7, %9 : vector<8x16xf32>
    %11 = vector.extract_strided_slice %8 {offsets = [0, 16], sizes = [8, 16], strides = [1, 1]} : vector<8x48xf32> to vector<8x16xf32>
    %12 = arith.addf %10, %11 : vector<8x16xf32>
    %13 = vector.extract_strided_slice %8 {offsets = [0, 32], sizes = [8, 16], strides = [1, 1]} : vector<8x48xf32> to vector<8x16xf32>
    %14 = arith.addf %12, %13 : vector<8x16xf32>
    %cst_7 = arith.constant 2.500000e-01 : f32
    %15 = vector.broadcast %cst_7 : f32 to vector<8x16xf32>
    %16 = arith.mulf %14, %15 : vector<8x16xf32>
    %17 = arith.truncf %16 : vector<8x16xf32> to vector<8x16xbf16>
    %c16 = arith.constant 16 : index
    %c0_8 = arith.constant 0 : index
    %18 = vector.load %arg3[%c16, %c0_8] : memref<256x128xbf16, #tpu.memory_space<vmem>>, vector<16x5xbf16>
    %cst_9 = arith.constant dense<0.000000e+00> : vector<8x5xf32>
    %19 = tpu.matmul %17, %18, %cst_9 {dimension_numbers = #tpu.dot_dimension_numbers<[1], [0], [0], [1], [0, 0, 1, 1], [], []>} : vector<8x16xbf16>, vector<16x5xbf16>, vector<8x5xf32> -> vector<8x5xf32>
    %20 = arith.truncf %7 : vector<8x16xf32> to vector<8x16xbf16>
    %21 = tpu.concatenate %0, %20 in 1 : vector<8x48xbf16>, vector<8x16xbf16> -> vector<8x64xbf16>
    %c32 = arith.constant 32 : index
    %c0_10 = arith.constant 0 : index
    %22 = vector.load %arg3[%c32, %c0_10] : memref<256x128xbf16, #tpu.memory_space<vmem>>, vector<64x96xbf16>
    %cst_11 = arith.constant dense<0.000000e+00> : vector<8x96xf32>
    %23 = tpu.matmul %21, %22, %cst_11 {dimension_numbers = #tpu.dot_dimension_numbers<[1], [0], [0], [1], [0, 0, 1, 1], [], []>} : vector<8x64xbf16>, vector<64x96xbf16>, vector<8x96xf32> -> vector<8x96xf32>
    %c1 = arith.constant 1 : index
    %c0_12 = arith.constant 0 : index
    %24 = vector.load %arg4[%c1, %c0_12] : memref<8x128xf32, #tpu.memory_space<vmem>>, vector<1x96xf32>
    %25 = vector.broadcast %24 : vector<1x96xf32> to vector<8x96xf32>
    %26 = arith.addf %23, %25 : vector<8x96xf32>
    %cst_13 = arith.constant 0.000000e+00 : f32
    %27 = vector.broadcast %cst_13 : f32 to vector<8x96xf32>
    %28 = arith.maximumf %26, %27 : vector<8x96xf32>
    %29 = arith.truncf %28 : vector<8x96xf32> to vector<8x96xbf16>
    %c96 = arith.constant 96 : index
    %c0_14 = arith.constant 0 : index
    %30 = vector.load %arg3[%c96, %c0_14] : memref<256x128xbf16, #tpu.memory_space<vmem>>, vector<96x48xbf16>
    %cst_15 = arith.constant dense<0.000000e+00> : vector<8x48xf32>
    %31 = tpu.matmul %29, %30, %cst_15 {dimension_numbers = #tpu.dot_dimension_numbers<[1], [0], [0], [1], [0, 0, 1, 1], [], []>} : vector<8x96xbf16>, vector<96x48xbf16>, vector<8x48xf32> -> vector<8x48xf32>
    %c2 = arith.constant 2 : index
    %c0_16 = arith.constant 0 : index
    %32 = vector.load %arg4[%c2, %c0_16] : memref<8x128xf32, #tpu.memory_space<vmem>>, vector<1x48xf32>
    %33 = vector.broadcast %32 : vector<1x48xf32> to vector<8x48xf32>
    %34 = arith.addf %31, %33 : vector<8x48xf32>
    %cst_17 = arith.constant 0.000000e+00 : f32
    %35 = vector.broadcast %cst_17 : f32 to vector<8x48xf32>
    %36 = arith.maximumf %34, %35 : vector<8x48xf32>
    %37 = vector.extract_strided_slice %36 {offsets = [0, 0], sizes = [8, 16], strides = [1, 1]} : vector<8x48xf32> to vector<8x16xf32>
    %38 = vector.extract_strided_slice %36 {offsets = [0, 16], sizes = [8, 16], strides = [1, 1]} : vector<8x48xf32> to vector<8x16xf32>
    %39 = vector.extract_strided_slice %36 {offsets = [0, 32], sizes = [8, 16], strides = [1, 1]} : vector<8x48xf32> to vector<8x16xf32>
    %c6 = arith.constant 6 : index
    %c0_18 = arith.constant 0 : index
    %40 = vector.load %arg4[%c6, %c0_18] : memref<8x128xf32, #tpu.memory_space<vmem>>, vector<1x5xf32>
    %41 = vector.broadcast %40 : vector<1x5xf32> to vector<8x5xf32>
    %42 = arith.addf %19, %41 : vector<8x5xf32>
    %43 = vector.extract_strided_slice %42 {offsets = [0, 0], sizes = [8, 3], strides = [1, 1]} : vector<8x5xf32> to vector<8x3xf32>
    %cst_19 = arith.constant dense<0xFF800000> : vector<8xf32>
    %44 = vector.multi_reduction <maximumf>, %43, %cst_19 [1] : vector<8x3xf32> to vector<8xf32>
    %45 = vector.shape_cast %44 : vector<8xf32> to vector<8x1xf32>
    %46 = vector.broadcast %45 : vector<8x1xf32> to vector<8x3xf32>
    %47 = arith.subf %43, %46 : vector<8x3xf32>
    %48 = math.exp %47 : vector<8x3xf32>
    %cst_20 = arith.constant dense<0.000000e+00> : vector<8xf32>
    %49 = vector.multi_reduction <add>, %48, %cst_20 [1] : vector<8x3xf32> to vector<8xf32>
    %50 = vector.shape_cast %49 : vector<8xf32> to vector<8x1xf32>
    %51 = tpu.reciprocal %50 {approx = true} : vector<8x1xf32> -> vector<8x1xf32>
    %52 = vector.broadcast %51 : vector<8x1xf32> to vector<8x3xf32>
    %53 = arith.mulf %48, %52 : vector<8x3xf32>
    %54 = vector.extract_strided_slice %42 {offsets = [0, 3], sizes = [8, 2], strides = [1, 1]} : vector<8x5xf32> to vector<8x2xf32>
    %cst_21 = arith.constant dense<0xFF800000> : vector<8xf32>
    %55 = vector.multi_reduction <maximumf>, %54, %cst_21 [1] : vector<8x2xf32> to vector<8xf32>
    %56 = vector.shape_cast %55 : vector<8xf32> to vector<8x1xf32>
    %57 = vector.broadcast %56 : vector<8x1xf32> to vector<8x2xf32>
    %58 = arith.subf %54, %57 : vector<8x2xf32>
    %59 = math.exp %58 : vector<8x2xf32>
    %cst_22 = arith.constant dense<0.000000e+00> : vector<8xf32>
    %60 = vector.multi_reduction <add>, %59, %cst_22 [1] : vector<8x2xf32> to vector<8xf32>
    %61 = vector.shape_cast %60 : vector<8xf32> to vector<8x1xf32>
    %62 = tpu.reciprocal %61 {approx = true} : vector<8x1xf32> -> vector<8x1xf32>
    %63 = vector.broadcast %62 : vector<8x1xf32> to vector<8x2xf32>
    %64 = arith.mulf %59, %63 : vector<8x2xf32>
    %65 = vector.extract_strided_slice %53 {offsets = [0, 0], sizes = [8, 1], strides = [1, 1]} : vector<8x3xf32> to vector<8x1xf32>
    %66 = vector.broadcast %65 : vector<8x1xf32> to vector<8x16xf32>
    %67 = arith.mulf %66, %37 : vector<8x16xf32>
    %68 = vector.extract_strided_slice %53 {offsets = [0, 1], sizes = [8, 1], strides = [1, 1]} : vector<8x3xf32> to vector<8x1xf32>
    %69 = vector.broadcast %68 : vector<8x1xf32> to vector<8x16xf32>
    %70 = arith.mulf %69, %38 : vector<8x16xf32>
    %71 = arith.addf %67, %70 : vector<8x16xf32>
    %72 = vector.extract_strided_slice %53 {offsets = [0, 2], sizes = [8, 1], strides = [1, 1]} : vector<8x3xf32> to vector<8x1xf32>
    %73 = vector.broadcast %72 : vector<8x1xf32> to vector<8x16xf32>
    %74 = arith.mulf %73, %39 : vector<8x16xf32>
    %75 = arith.addf %71, %74 : vector<8x16xf32>
    %76 = arith.truncf %75 : vector<8x16xf32> to vector<8x16xbf16>
    %c192 = arith.constant 192 : index
    %c0_23 = arith.constant 0 : index
    %77 = vector.load %arg3[%c192, %c0_23] : memref<256x128xbf16, #tpu.memory_space<vmem>>, vector<16x32xbf16>
    %cst_24 = arith.constant dense<0.000000e+00> : vector<8x32xf32>
    %78 = tpu.matmul %76, %77, %cst_24 {dimension_numbers = #tpu.dot_dimension_numbers<[1], [0], [0], [1], [0, 0, 1, 1], [], []>} : vector<8x16xbf16>, vector<16x32xbf16>, vector<8x32xf32> -> vector<8x32xf32>
    %c3 = arith.constant 3 : index
    %c0_25 = arith.constant 0 : index
    %79 = vector.load %arg4[%c3, %c0_25] : memref<8x128xf32, #tpu.memory_space<vmem>>, vector<1x32xf32>
    %80 = vector.broadcast %79 : vector<1x32xf32> to vector<8x32xf32>
    %81 = arith.addf %78, %80 : vector<8x32xf32>
    %cst_26 = arith.constant 0.000000e+00 : f32
    %82 = vector.broadcast %cst_26 : f32 to vector<8x32xf32>
    %83 = arith.maximumf %81, %82 : vector<8x32xf32>
    %84 = arith.truncf %83 : vector<8x32xf32> to vector<8x32xbf16>
    %c208 = arith.constant 208 : index
    %c0_27 = arith.constant 0 : index
    %85 = vector.load %arg3[%c208, %c0_27] : memref<256x128xbf16, #tpu.memory_space<vmem>>, vector<32x16xbf16>
    %cst_28 = arith.constant dense<0.000000e+00> : vector<8x16xf32>
    %86 = tpu.matmul %84, %85, %cst_28 {dimension_numbers = #tpu.dot_dimension_numbers<[1], [0], [0], [1], [0, 0, 1, 1], [], []>} : vector<8x32xbf16>, vector<32x16xbf16>, vector<8x16xf32> -> vector<8x16xf32>
    %c4 = arith.constant 4 : index
    %c0_29 = arith.constant 0 : index
    %87 = vector.load %arg4[%c4, %c0_29] : memref<8x128xf32, #tpu.memory_space<vmem>>, vector<1x16xf32>
    %88 = vector.broadcast %87 : vector<1x16xf32> to vector<8x16xf32>
    %89 = arith.addf %86, %88 : vector<8x16xf32>
    %cst_30 = arith.constant 0.000000e+00 : f32
    %90 = vector.broadcast %cst_30 : f32 to vector<8x16xf32>
    %91 = arith.maximumf %89, %90 : vector<8x16xf32>
    %92 = arith.truncf %91 : vector<8x16xf32> to vector<8x16xbf16>
    %c240 = arith.constant 240 : index
    %c0_31 = arith.constant 0 : index
    %93 = vector.load %arg3[%c240, %c0_31] : memref<256x128xbf16, #tpu.memory_space<vmem>>, vector<16x2xbf16>
    %cst_32 = arith.constant dense<0.000000e+00> : vector<8x2xf32>
    %94 = tpu.matmul %92, %93, %cst_32 {dimension_numbers = #tpu.dot_dimension_numbers<[1], [0], [0], [1], [0, 0, 1, 1], [], []>} : vector<8x16xbf16>, vector<16x2xbf16>, vector<8x2xf32> -> vector<8x2xf32>
    %c5 = arith.constant 5 : index
    %c0_33 = arith.constant 0 : index
    %95 = vector.load %arg4[%c5, %c0_33] : memref<8x128xf32, #tpu.memory_space<vmem>>, vector<1x2xf32>
    %96 = vector.broadcast %95 : vector<1x2xf32> to vector<8x2xf32>
    %97 = arith.addf %94, %96 : vector<8x2xf32>
    %98 = arith.negf %97 : vector<8x2xf32>
    %99 = math.exp %98 : vector<8x2xf32>
    %cst_34 = arith.constant 1.000000e+00 : f32
    %100 = vector.broadcast %cst_34 : f32 to vector<8x2xf32>
    %101 = arith.addf %100, %99 : vector<8x2xf32>
    %102 = arith.divf %100, %101 : vector<8x2xf32>
    %103 = arith.mulf %64, %102 : vector<8x2xf32>
    %cst_35 = arith.constant dense<0.000000e+00> : vector<8xf32>
    %104 = vector.multi_reduction <add>, %103, %cst_35 [1] : vector<8x2xf32> to vector<8xf32>
    %105 = vector.shape_cast %104 : vector<8xf32> to vector<8x1xf32>
    %cst_36 = arith.constant 2.000000e+00 : f32
    %106 = vector.broadcast %cst_36 : f32 to vector<8x1xf32>
    %107 = arith.divf %105, %106 : vector<8x1xf32>
    %c7 = arith.constant 7 : index
    %c0_37 = arith.constant 0 : index
    %108 = vector.load %arg4[%c7, %c0_37] : memref<8x128xf32, #tpu.memory_space<vmem>>, vector<1x5xf32>
    %109 = vector.broadcast %108 : vector<1x5xf32> to vector<8x5xf32>
    %110 = arith.addf %19, %109 : vector<8x5xf32>
    %111 = vector.extract_strided_slice %110 {offsets = [0, 0], sizes = [8, 3], strides = [1, 1]} : vector<8x5xf32> to vector<8x3xf32>
    %cst_38 = arith.constant dense<0xFF800000> : vector<8xf32>
    %112 = vector.multi_reduction <maximumf>, %111, %cst_38 [1] : vector<8x3xf32> to vector<8xf32>
    %113 = vector.shape_cast %112 : vector<8xf32> to vector<8x1xf32>
    %114 = vector.broadcast %113 : vector<8x1xf32> to vector<8x3xf32>
    %115 = arith.subf %111, %114 : vector<8x3xf32>
    %116 = math.exp %115 : vector<8x3xf32>
    %cst_39 = arith.constant dense<0.000000e+00> : vector<8xf32>
    %117 = vector.multi_reduction <add>, %116, %cst_39 [1] : vector<8x3xf32> to vector<8xf32>
    %118 = vector.shape_cast %117 : vector<8xf32> to vector<8x1xf32>
    %119 = tpu.reciprocal %118 {approx = true} : vector<8x1xf32> -> vector<8x1xf32>
    %120 = vector.broadcast %119 : vector<8x1xf32> to vector<8x3xf32>
    %121 = arith.mulf %116, %120 : vector<8x3xf32>
    %122 = vector.extract_strided_slice %110 {offsets = [0, 3], sizes = [8, 2], strides = [1, 1]} : vector<8x5xf32> to vector<8x2xf32>
    %cst_40 = arith.constant dense<0xFF800000> : vector<8xf32>
    %123 = vector.multi_reduction <maximumf>, %122, %cst_40 [1] : vector<8x2xf32> to vector<8xf32>
    %124 = vector.shape_cast %123 : vector<8xf32> to vector<8x1xf32>
    %125 = vector.broadcast %124 : vector<8x1xf32> to vector<8x2xf32>
    %126 = arith.subf %122, %125 : vector<8x2xf32>
    %127 = math.exp %126 : vector<8x2xf32>
    %cst_41 = arith.constant dense<0.000000e+00> : vector<8xf32>
    %128 = vector.multi_reduction <add>, %127, %cst_41 [1] : vector<8x2xf32> to vector<8xf32>
    %129 = vector.shape_cast %128 : vector<8xf32> to vector<8x1xf32>
    %130 = tpu.reciprocal %129 {approx = true} : vector<8x1xf32> -> vector<8x1xf32>
    %131 = vector.broadcast %130 : vector<8x1xf32> to vector<8x2xf32>
    %132 = arith.mulf %127, %131 : vector<8x2xf32>
    %133 = vector.extract_strided_slice %121 {offsets = [0, 0], sizes = [8, 1], strides = [1, 1]} : vector<8x3xf32> to vector<8x1xf32>
    %134 = vector.broadcast %133 : vector<8x1xf32> to vector<8x16xf32>
    %135 = arith.mulf %134, %37 : vector<8x16xf32>
    %136 = vector.extract_strided_slice %121 {offsets = [0, 1], sizes = [8, 1], strides = [1, 1]} : vector<8x3xf32> to vector<8x1xf32>
    %137 = vector.broadcast %136 : vector<8x1xf32> to vector<8x16xf32>
    %138 = arith.mulf %137, %38 : vector<8x16xf32>
    %139 = arith.addf %135, %138 : vector<8x16xf32>
    %140 = vector.extract_strided_slice %121 {offsets = [0, 2], sizes = [8, 1], strides = [1, 1]} : vector<8x3xf32> to vector<8x1xf32>
    %141 = vector.broadcast %140 : vector<8x1xf32> to vector<8x16xf32>
    %142 = arith.mulf %141, %39 : vector<8x16xf32>
    %143 = arith.addf %139, %142 : vector<8x16xf32>
    %144 = arith.truncf %143 : vector<8x16xf32> to vector<8x16xbf16>
    %c192_42 = arith.constant 192 : index
    %c0_43 = arith.constant 0 : index
    %145 = vector.load %arg3[%c192_42, %c0_43] : memref<256x128xbf16, #tpu.memory_space<vmem>>, vector<16x32xbf16>
    %cst_44 = arith.constant dense<0.000000e+00> : vector<8x32xf32>
    %146 = tpu.matmul %144, %145, %cst_44 {dimension_numbers = #tpu.dot_dimension_numbers<[1], [0], [0], [1], [0, 0, 1, 1], [], []>} : vector<8x16xbf16>, vector<16x32xbf16>, vector<8x32xf32> -> vector<8x32xf32>
    %c3_45 = arith.constant 3 : index
    %c0_46 = arith.constant 0 : index
    %147 = vector.load %arg4[%c3_45, %c0_46] : memref<8x128xf32, #tpu.memory_space<vmem>>, vector<1x32xf32>
    %148 = vector.broadcast %147 : vector<1x32xf32> to vector<8x32xf32>
    %149 = arith.addf %146, %148 : vector<8x32xf32>
    %cst_47 = arith.constant 0.000000e+00 : f32
    %150 = vector.broadcast %cst_47 : f32 to vector<8x32xf32>
    %151 = arith.maximumf %149, %150 : vector<8x32xf32>
    %152 = arith.truncf %151 : vector<8x32xf32> to vector<8x32xbf16>
    %c208_48 = arith.constant 208 : index
    %c0_49 = arith.constant 0 : index
    %153 = vector.load %arg3[%c208_48, %c0_49] : memref<256x128xbf16, #tpu.memory_space<vmem>>, vector<32x16xbf16>
    %cst_50 = arith.constant dense<0.000000e+00> : vector<8x16xf32>
    %154 = tpu.matmul %152, %153, %cst_50 {dimension_numbers = #tpu.dot_dimension_numbers<[1], [0], [0], [1], [0, 0, 1, 1], [], []>} : vector<8x32xbf16>, vector<32x16xbf16>, vector<8x16xf32> -> vector<8x16xf32>
    %c4_51 = arith.constant 4 : index
    %c0_52 = arith.constant 0 : index
    %155 = vector.load %arg4[%c4_51, %c0_52] : memref<8x128xf32, #tpu.memory_space<vmem>>, vector<1x16xf32>
    %156 = vector.broadcast %155 : vector<1x16xf32> to vector<8x16xf32>
    %157 = arith.addf %154, %156 : vector<8x16xf32>
    %cst_53 = arith.constant 0.000000e+00 : f32
    %158 = vector.broadcast %cst_53 : f32 to vector<8x16xf32>
    %159 = arith.maximumf %157, %158 : vector<8x16xf32>
    %160 = arith.truncf %159 : vector<8x16xf32> to vector<8x16xbf16>
    %c240_54 = arith.constant 240 : index
    %c0_55 = arith.constant 0 : index
    %161 = vector.load %arg3[%c240_54, %c0_55] : memref<256x128xbf16, #tpu.memory_space<vmem>>, vector<16x2xbf16>
    %cst_56 = arith.constant dense<0.000000e+00> : vector<8x2xf32>
    %162 = tpu.matmul %160, %161, %cst_56 {dimension_numbers = #tpu.dot_dimension_numbers<[1], [0], [0], [1], [0, 0, 1, 1], [], []>} : vector<8x16xbf16>, vector<16x2xbf16>, vector<8x2xf32> -> vector<8x2xf32>
    %c5_57 = arith.constant 5 : index
    %c0_58 = arith.constant 0 : index
    %163 = vector.load %arg4[%c5_57, %c0_58] : memref<8x128xf32, #tpu.memory_space<vmem>>, vector<1x2xf32>
    %164 = vector.broadcast %163 : vector<1x2xf32> to vector<8x2xf32>
    %165 = arith.addf %162, %164 : vector<8x2xf32>
    %166 = arith.negf %165 : vector<8x2xf32>
    %167 = math.exp %166 : vector<8x2xf32>
    %cst_59 = arith.constant 1.000000e+00 : f32
    %168 = vector.broadcast %cst_59 : f32 to vector<8x2xf32>
    %169 = arith.addf %168, %167 : vector<8x2xf32>
    %170 = arith.divf %168, %169 : vector<8x2xf32>
    %171 = arith.mulf %132, %170 : vector<8x2xf32>
    %cst_60 = arith.constant dense<0.000000e+00> : vector<8xf32>
    %172 = vector.multi_reduction <add>, %171, %cst_60 [1] : vector<8x2xf32> to vector<8xf32>
    %173 = vector.shape_cast %172 : vector<8xf32> to vector<8x1xf32>
    %cst_61 = arith.constant 2.000000e+00 : f32
    %174 = vector.broadcast %cst_61 : f32 to vector<8x1xf32>
    %175 = arith.divf %173, %174 : vector<8x1xf32>
    %176 = tpu.concatenate %107, %175 in 1 : vector<8x1xf32>, vector<8x1xf32> -> vector<8x2xf32>
    %c0_62 = arith.constant 0 : index
    %c0_63 = arith.constant 0 : index
    %177 = vector.load %arg5[%c0_62, %c0_63] : memref<8x2xf32, #tpu.memory_space<vmem>>, vector<8x2xf32>
    tpu.vector_store %arg5[%c0_62, %c0_63], %176 {strides = array<i32>} : memref<8x2xf32, #tpu.memory_space<vmem>>, vector<8x2xf32>,
    return
  }
  func.func @transform_0(%arg0: i32) -> (i32, i32) {
    %c0_i32 = arith.constant 0 : i32
    %c0_i32_0 = arith.constant 0 : i32
    return %arg0, %c0_i32 : i32, i32
  }
  func.func @transform_1(%arg0: i32) -> (i32, i32) {
    %c0_i32 = arith.constant 0 : i32
    %c0_i32_0 = arith.constant 0 : i32
    return %arg0, %c0_i32 : i32, i32
  }
  func.func @transform_2(%arg0: i32) -> (i32, i32) {
    %c0_i32 = arith.constant 0 : i32
    %c0_i32_0 = arith.constant 0 : i32
    %c0_i32_1 = arith.constant 0 : i32
    return %c0_i32, %c0_i32_0 : i32, i32
  }
  func.func @transform_3(%arg0: i32) -> (i32, i32) {
    %c0_i32 = arith.constant 0 : i32
    %c0_i32_0 = arith.constant 0 : i32
    %c0_i32_1 = arith.constant 0 : i32
    return %c0_i32, %c0_i32_0 : i32, i32
  }
  func.func @transform_4(%arg0: i32) -> (i32, i32) {
    %c0_i32 = arith.constant 0 : i32
    %c0_i32_0 = arith.constant 0 : i32
    return %arg0, %c0_i32 : i32, i32
  }
}

</mosaic_0001>

<llo_original>
// kernel: tpu_custom_call.1
$region0: #{tpu_custom_call.1}
  #allocation0 [shape = 'u32[]', space=smem, size = 0x4, offset = 0x4, fixed_abs, tag = 'smem constant byte address 0x4 - core index']
  #allocation1 [shape = 'u32[144,128]{1,0:T(1,128)}', space=vmem, size = 0x12000, scoped, tag = 'internal scratch']
  %s0 = inlined_call_operand.vmem [shape: bf16[16,48], index: 0, kind: input, shape index: {}]
  %s1 = inlined_call_operand.vmem [shape: f32[16,8], index: 1, kind: input, shape index: {}]
  %s2 = inlined_call_operand.hbm [shape: bf16[256,128], index: 2, kind: input, shape index: {}]
  %s3 = inlined_call_operand.vmem [shape: f32[8,128], index: 3, kind: input, shape index: {}]
  %s4 = inlined_call_operand.vmem [shape: f32[16,2], index: 4, kind: output, shape index: {}]
  %s5 = sld [smem:[#allocation0]]
  $region53: #{tpu_custom_call.1} parent=0
    _
  %s7 = ssub.s32 1, %s5
  %s8 = scalar_select 0, %s7, %s5
  $region1: #{tpu_custom_call.1} parent=0
    #allocation2 [shape = 'u8[65536]{0}', space=vmem, size = 0x10000, scoped, tag = 'input window, operand 2, single buffered']
    #allocation3 [shape = 's32[2]{0}', space=sflag, size = 0x8, scoped, tag = 'scoped memory for tpu_custom_call.1']
    %9 = vsyncpa [#allocation3], 0
    loop: start=0, step=1, limit=4
    $region2: #{tpu_custom_call.1} parent=1 // loop_pre_header
      _
    $region3: #{tpu_custom_call.1} parent=1 // loop_header
      %s11 = sphi 0, %s15
      %p12 = scmp.ge.s32.totalorder %s11, 4
      %s21 = sphi 0, %s23
      %s24 = sphi 0, %s21
      %s25 = sphi 0, %s24
      %s41 = sphi 0, %s25
      %s47 = sphi 0, %s49
      %s50 = sphi 0, %s47
      %s51 = sphi 0, %s50
      %s67 = sphi 0, %s51
      %s71 = sphi 0, %s71
      %s73 = sphi 0, %s71
      %s74 = sphi 0, %s73
      %s88 = sphi 0, %s74
      %s92 = sphi 0, %s92
      %s94 = sphi 0, %s92
      %s95 = sphi 0, %s94
      %s109 = sphi 0, %s95
      %s115 = sphi 0, %s117
      %s118 = sphi 0, %s115
      %s119 = sphi 0, %s118
      %s135 = sphi 0, %s119
    $region4: #{tpu_custom_call.1} parent=1 // loop_header_branch
      %14 = sbr.rel (%p12) target = $region8
    $region5: #{tpu_custom_call.1} parent=1 // loop_body
      %s16 = ssub.s32 %s11, 1
      %s17 = ssub.s32 %s11, 2
      %s18 = sadd.s32 %s11, 1
      %s19 = ssub.s32 %s11, %s18
      %p20 = scmp.eq.s32.totalorder %s19, 0
      %s22 = sadd.s32 %s21, 1
      %s23 = scalar_select %p20, %s21, %s22
      %p26 = pneg %p20
      %p27 = scmp.eq.s32.totalorder %s11, 1
      %p28 = por %p26, %p27
      %p29 = scmp.ne.s32.totalorder %s21, %s24
      %p30 = scmp.eq.s32.totalorder %s11, 0
      %p31 = por %p29, %p30
      %p32 = scmp.ne.s32.totalorder %s21, %s24
      %p33 = scmp.eq.s32.totalorder %s16, 1
      %p34 = por %p32, %p33
      %p35 = scmp.ne.s32.totalorder %s24, %s25
      %p36 = scmp.eq.s32.totalorder %s16, 0
      %p37 = por %p35, %p36
      %p38 = scmp.ne.s32.totalorder %s24, %s25
      %p39 = scmp.eq.s32.totalorder %s17, 1
      %p40 = por %p38, %p39
      %p42 = scmp.ne.s32.totalorder %s25, %s41
      %p43 = scmp.eq.s32.totalorder %s17, 0
      %p44 = por %p42, %p43
      %s45 = ssub.s32 %s11, %s18
      %p46 = scmp.eq.s32.totalorder %s45, 0
      %s48 = sadd.s32 %s47, 1
      %s49 = scalar_select %p46, %s47, %s48
      %p52 = pneg %p46
      %p53 = scmp.eq.s32.totalorder %s11, 1
      %p54 = por %p52, %p53
      %p55 = scmp.ne.s32.totalorder %s47, %s50
      %p56 = scmp.eq.s32.totalorder %s11, 0
      %p57 = por %p55, %p56
      %p58 = scmp.ne.s32.totalorder %s47, %s50
      %p59 = scmp.eq.s32.totalorder %s16, 1
      %p60 = por %p58, %p59
      %p61 = scmp.ne.s32.totalorder %s50, %s51
      %p62 = scmp.eq.s32.totalorder %s16, 0
      %p63 = por %p61, %p62
      %p64 = scmp.ne.s32.totalorder %s50, %s51
      %p65 = scmp.eq.s32.totalorder %s17, 1
      %p66 = por %p64, %p65
      %p68 = scmp.ne.s32.totalorder %s51, %s67
      %p69 = scmp.eq.s32.totalorder %s17, 0
      %p70 = por %p68, %p69
      %s72 = sadd.s32 %s71, 1
      %p75 = scmp.eq.s32.totalorder %s11, 1
      %p76 = scmp.ne.s32.totalorder %s71, %s73
      %p77 = scmp.eq.s32.totalorder %s11, 0
      %p78 = por %p76, %p77
      %p79 = scmp.ne.s32.totalorder %s71, %s73
      %p80 = scmp.eq.s32.totalorder %s16, 1
      %p81 = por %p79, %p80
      %p82 = scmp.ne.s32.totalorder %s73, %s74
      %p83 = scmp.eq.s32.totalorder %s16, 0
      %p84 = por %p82, %p83
      %p85 = scmp.ne.s32.totalorder %s73, %s74
      %p86 = scmp.eq.s32.totalorder %s17, 1
      %p87 = por %p85, %p86
      %p89 = scmp.ne.s32.totalorder %s74, %s88
      %p90 = scmp.eq.s32.totalorder %s17, 0
      %p91 = por %p89, %p90
      %s93 = sadd.s32 %s92, 1
      %p96 = scmp.eq.s32.totalorder %s11, 1
      %p97 = scmp.ne.s32.totalorder %s92, %s94
      %p98 = scmp.eq.s32.totalorder %s11, 0
      %p99 = por %p97, %p98
      %p100 = scmp.ne.s32.totalorder %s92, %s94
      %p101 = scmp.eq.s32.totalorder %s16, 1
      %p102 = por %p100, %p101
      %p103 = scmp.ne.s32.totalorder %s94, %s95
      %p104 = scmp.eq.s32.totalorder %s16, 0
      %p105 = por %p103, %p104
      %p106 = scmp.ne.s32.totalorder %s94, %s95
      %p107 = scmp.eq.s32.totalorder %s17, 1
      %p108 = por %p106, %p107
      %p110 = scmp.ne.s32.totalorder %s95, %s109
      %p111 = scmp.eq.s32.totalorder %s17, 0
      %p112 = por %p110, %p111
      %s113 = ssub.s32 %s11, %s18
      %p114 = scmp.eq.s32.totalorder %s113, 0
      %s116 = sadd.s32 %s115, 1
      %s117 = scalar_select %p114, %s115, %s116
      %p120 = pneg %p114
      %p121 = scmp.eq.s32.totalorder %s11, 1
      %p122 = por %p120, %p121
      %p123 = scmp.ne.s32.totalorder %s115, %s118
      %p124 = scmp.eq.s32.totalorder %s11, 0
      %p125 = por %p123, %p124
      %p126 = scmp.ne.s32.totalorder %s115, %s118
      %p127 = scmp.eq.s32.totalorder %s16, 1
      %p128 = por %p126, %p127
      %p129 = scmp.ne.s32.totalorder %s118, %s119
      %p130 = scmp.eq.s32.totalorder %s16, 0
      %p131 = por %p129, %p130
      %p132 = scmp.ne.s32.totalorder %s118, %s119
      %p133 = scmp.eq.s32.totalorder %s17, 1
      %p134 = por %p132, %p133
      %p136 = scmp.ne.s32.totalorder %s119, %s135
      %p137 = scmp.eq.s32.totalorder %s17, 0
      %p138 = por %p136, %p137
      %p139 = scmp.le.s32.totalorder 1, %s11
      %p140 = scmp.lt.s32.totalorder %s11, 3
      %p141 = pnand %p139, %p140
      %p142 = pneg %p141
      // Predicated region
      $region9: #{tpu_custom_call.1} parent=5 // pred_check
        _
      $region10: #{tpu_custom_call.1} parent=5 // pred_check_branch
        %144 = sbr.rel (%p141) target = $region12
      $region11: #{tpu_custom_call.1} parent=5 // pred_region
        %s145 = ssub.s32 %s11, 1
        // Predicated region
        $region13: #{tpu_custom_call.1} parent=11 // pred_check
          %p146 = pneg %p84
        $region14: #{tpu_custom_call.1} parent=11 // pred_check_branch
          %148 = sbr.rel (%p146) target = $region16
        $region15: #{tpu_custom_call.1} parent=11 // pred_region
          %s150 = ssub.s32 2048, 2048
          %151 = vsyncadd [#allocation3], %s150
          %s152 = sshll.u32 [#allocation2], 4
          %s153 = int_to_ptr.vmem [resolvable:$true] %s152
          %158 = dma.hbm_to_vmem [thread:$0]  %s2, 2048, %s153, [#allocation3], 64, 64, 4
        $region16: #{tpu_custom_call.1} parent=11 // pred_fallthru
          _
        // Predicated region
        $region17: #{tpu_custom_call.1} parent=11 // pred_check
          %p159 = pneg %p105
        $region18: #{tpu_custom_call.1} parent=11 // pred_check_branch
          %161 = sbr.rel (%p159) target = $region20
        $region19: #{tpu_custom_call.1} parent=11 // pred_region
          _
        $region20: #{tpu_custom_call.1} parent=11 // pred_fallthru
          _
      $region12: #{tpu_custom_call.1} parent=5 // pred_fallthru
        _
      %p162 = scmp.lt.s32.totalorder %s11, 2
      // Predicated region
      $region21: #{tpu_custom_call.1} parent=5 // pred_check
        %p163 = pneg %p162
      $region22: #{tpu_custom_call.1} parent=5 // pred_check_branch
        %165 = sbr.rel (%p163) target = $region24
      $region23: #{tpu_custom_call.1} parent=5 // pred_region
        // Predicated region
        $region25: #{tpu_custom_call.1} parent=23 // pred_check
          %p166 = pneg %p31
        $region26: #{tpu_custom_call.1} parent=23 // pred_check_branch
          %168 = sbr.rel (%p166) target = $region28
        $region27: #{tpu_custom_call.1} parent=23 // pred_region
          %p169 = scmp.lt.s32.totalorder %s11, 1
          %s170 = scalar_select %p169, %s11, 1
          %s171 = smul.addr %s170, 4
          %s172 = scalar_lea.vmem %s0, %s171
        $region28: #{tpu_custom_call.1} parent=23 // pred_fallthru
          _
        // Predicated region
        $region29: #{tpu_custom_call.1} parent=23 // pred_check
          %p173 = pneg %p57
        $region30: #{tpu_custom_call.1} parent=23 // pred_check_branch
          %175 = sbr.rel (%p173) target = $region32
        $region31: #{tpu_custom_call.1} parent=23 // pred_region
          %p176 = scmp.lt.s32.totalorder %s11, 1
          %s177 = scalar_select %p176, %s11, 1
          %s178 = smul.addr %s177, 8
          %s179 = scalar_lea.vmem %s1, %s178
        $region32: #{tpu_custom_call.1} parent=23 // pred_fallthru
          _
      $region24: #{tpu_custom_call.1} parent=5 // pred_fallthru
        _
      %p180 = scmp.le.s32.totalorder 1, %s11
      %p181 = scmp.lt.s32.totalorder %s11, 3
      %p182 = pnand %p180, %p181
      %p183 = pneg %p182
      // Predicated region
      $region33: #{tpu_custom_call.1} parent=5 // pred_check
        _
      $region34: #{tpu_custom_call.1} parent=5 // pred_check_branch
        %185 = sbr.rel (%p182) target = $region36
      $region35: #{tpu_custom_call.1} parent=5 // pred_region
        %s186 = ssub.s32 %s11, 1
        // Predicated region
        $region37: #{tpu_custom_call.1} parent=35 // pred_check
          %p187 = pneg %p84
        $region38: #{tpu_custom_call.1} parent=35 // pred_check_branch
          %189 = sbr.rel (%p187) target = $region40
        $region39: #{tpu_custom_call.1} parent=35 // pred_region
          %190 = dma.done [#allocation3], 2048
        $region40: #{tpu_custom_call.1} parent=35 // pred_fallthru
          _
        %p191 = scmp.lt.s32.totalorder %s16, 1
        %s192 = scalar_select %p191, %s16, 1
        %s193 = smul.addr %s192, 4
        %s194 = scalar_lea.vmem %s0, %s193
        %p195 = pneg %p37
        %p196 = pneg %p34
        %p197 = scmp.lt.s32.totalorder %s16, 1
        %s198 = scalar_select %p197, %s16, 1
        %s199 = smul.addr %s198, 8
        %s200 = scalar_lea.vmem %s1, %s199
        %p201 = pneg %p63
        %p202 = pneg %p60
        %p203 = pneg %p84
        %p204 = pneg %p81
        %p205 = pneg %p105
        %p206 = pneg %p102
        %p207 = pneg %p131
        %p208 = pneg %p128
        %p209 = scmp.lt.s32.totalorder %s16, 1
        %s210 = scalar_select %p209, %s16, 1
        %s211 = smul.addr %s210, 8
        %s212 = scalar_lea.vmem %s4, %s211
        %p213 = scmp.lt.s32.totalorder %s16, 1
        %s214 = scalar_select %p213, %s16, 1
        %s215 = smul.addr %s214, 4
        %s216 = scalar_lea.vmem %s0, %s215
        %p217 = scmp.lt.s32.totalorder %s16, 1
        %s218 = scalar_select %p217, %s16, 1
        %s219 = smul.addr %s218, 8
        %s220 = scalar_lea.vmem %s1, %s219
        %p221 = scmp.lt.s32.totalorder %s16, 1
        %s222 = scalar_select %p221, %s16, 1
        %s223 = smul.addr %s222, 8
        %s224 = scalar_lea.vmem %s4, %s223
        %v226 = vld [vmem:[%s216] sm:$0xf]
        %v227 = vld [vmem:[%s220] sm:$0xff]
        %v228 = vpack.c.bf16 %v227, %v227
        %v229 = vld [vmem:[#allocation2] sm:$0xf]
        %v230 = vld [vmem:[%s3] sm:$0x1]
        %v231 = vlaneseq
        %v232 = vshrl.u32 %v231, 7
        %v233 = vsub.s32 0, %v232
        %v234 = vrot.slane %v230, %v233
        %vm235 = vcmask 64512
        %v237 = vsel %vm235, %v228, 0
        %vm239 = vcmask 1043456
        %v241 = vsel %vm239, %v229, 0
        %243 = vmatprep.subr.bf16.mxu0 0
        %244 = vmatpush1.bf16.msra.mxu0 %v241
        %245 = vmatprep.subr.bf16.mxu0 0
        %246 = vmatpush1.bf16.msra.mxu0 0
        %247 = vmatprep.subr.bf16.mxu0 0
        %248 = vmatpush1.bf16.msra.mxu0 0
        %249 = vmatprep.subr.bf16.mxu0 0
        %250 = vmatpush1.bf16.msra.mxu0 0
        %251 = vmatprep.subr.bf16.mxu0 0
        %252 = vmatpush1.bf16.msra.mxu0 0
        %253 = vmatprep.subr.bf16.mxu0 0
        %254 = vmatpush1.bf16.msra.mxu0 0
        %255 = vmatprep.subr.bf16.mxu0 0
        %256 = vmatpush1.bf16.msra.mxu0 0
        %257 = vmatprep.subr.bf16.mxu0 0
        %258 = vmatpush1.bf16.msra.mxu0 0
        %259 = vmatprep.subr.bf16.mxu0 0
        %260 = vmatpush1.bf16.msra.mxu0 0
        %261 = vmatprep.subr.bf16.mxu0 0
        %262 = vmatpush1.bf16.msra.mxu0 0
        %263 = vmatprep.subr.bf16.mxu0 0
        %264 = vmatpush1.bf16.msra.mxu0 0
        %265 = vmatprep.subr.bf16.mxu0 0
        %266 = vmatpush1.bf16.msra.mxu0 0
        %267 = vmatprep.subr.bf16.mxu0 0
        %268 = vmatpush1.bf16.msra.mxu0 0
        %269 = vmatprep.subr.bf16.mxu0 0
        %270 = vmatpush1.bf16.msra.mxu0 0
        %271 = vmatprep.subr.bf16.mxu0 0
        %272 = vmatpush1.bf16.msra.mxu0 0
        %273 = vmatprep.subr.bf16.mxu0 0
        %274 = vmatpush1.bf16.msra.mxu0 0
        %275 = vmatprep.mubr.bf16.mxu0 0
        %276 = vmatmul.mubr.bf16.gmra.mrb[0].mxu0 %v237
        %v277 = vpop.f32.mrb[0].mxu0
        %v278 = vadd.f32 %v234, %v277
        %v279 = vpop.f32.mrb[0].mxu0
        %v280 = vpop.f32.mrb[0].mxu0
        %v281 = vpop.f32.mrb[0].mxu0
        %282 = vdwg.mxu0
        %v283 = vunpack.c.l.bf16 %v226
        %v284 = vadd.f32 %v278, %v283
        %286 = vrot.lane.b32.xlu0 %v283, 112
        %v287 = vpop.permute.xlu0 %286
        %v289 = vadd.f32 %v284, %v287
        %290 = vrot.lane.b32.xlu0 %v283, 96
        %v291 = vpop.permute.xlu0 %290
        %v293 = vadd.f32 %v289, %v291
        %v294 = vmul.f32 %v293, 0.25
        %v295 = vpack.c.bf16 %v294, %v294
        %v296 = vld [vmem:[#allocation2 + $0x8] sm:$0xf]
        %v297 = vld [vmem:[#allocation2 + $0xc] sm:$0xf]
        %v300 = vunpack.c.l.b16 %v296
        %v301 = vunpack.c.l.b16 %v297
        %v302 = vpack.c.b16 %v301, %v300
        %vm304 = vcmask 130048
        %v306 = vsel %vm304, %v295, 0
        %308 = vmatprep.subr.bf16.mxu0 0
        %309 = vmatpush1.bf16.msra.mxu0 %v302
        %310 = vmatprep.subr.bf16.mxu0 0
        %311 = vmatpush1.bf16.msra.mxu0 0
        %312 = vmatprep.subr.bf16.mxu0 0
        %313 = vmatpush1.bf16.msra.mxu0 0
        %314 = vmatprep.subr.bf16.mxu0 0
        %315 = vmatpush1.bf16.msra.mxu0 0
        %316 = vmatprep.subr.bf16.mxu0 0
        %317 = vmatpush1.bf16.msra.mxu0 0
        %318 = vmatprep.subr.bf16.mxu0 0
        %319 = vmatpush1.bf16.msra.mxu0 0
        %320 = vmatprep.subr.bf16.mxu0 0
        %321 = vmatpush1.bf16.msra.mxu0 0
        %322 = vmatprep.subr.bf16.mxu0 0
        %323 = vmatpush1.bf16.msra.mxu0 0
        %324 = vmatprep.subr.bf16.mxu0 0
        %325 = vmatpush1.bf16.msra.mxu0 0
        %326 = vmatprep.subr.bf16.mxu0 0
        %327 = vmatpush1.bf16.msra.mxu0 0
        %328 = vmatprep.subr.bf16.mxu0 0
        %329 = vmatpush1.bf16.msra.mxu0 0
        %330 = vmatprep.subr.bf16.mxu0 0
        %331 = vmatpush1.bf16.msra.mxu0 0
        %332 = vmatprep.subr.bf16.mxu0 0
        %333 = vmatpush1.bf16.msra.mxu0 0
        %334 = vmatprep.subr.bf16.mxu0 0
        %335 = vmatpush1.bf16.msra.mxu0 0
        %336 = vmatprep.subr.bf16.mxu0 0
        %337 = vmatpush1.bf16.msra.mxu0 0
        %338 = vmatprep.subr.bf16.mxu0 0
        %339 = vmatpush1.bf16.msra.mxu0 0
        %340 = vmatprep.mubr.bf16.mxu0 0
        %341 = vmatmul.mubr.bf16.gmra.mrb[0].mxu0 %v306
        %v342 = vpop.f32.mrb[0].mxu0
        %v343 = vadd.f32 0.0, %v342
        %v344 = vpop.f32.mrb[0].mxu0
        %v345 = vpop.f32.mrb[0].mxu0
        %v346 = vpop.f32.mrb[0].mxu0
        %347 = vdwg.mxu0
        %v348 = vpack.c.bf16 %v278, %v278
        %350 = vrot.lane.b32.xlu0 %v348, 48
        %v351 = vpop.permute.xlu0 %350
        %vm352 = vcmask 392192
        %v355 = vsel %vm352, %v226, %v351
        %v356 = vld [vmem:[#allocation2 + $0x10] sm:$0xf]
        %v357 = vld [vmem:[#allocation2 + $0x14] sm:$0xf]
        %v358 = vld [vmem:[#allocation2 + $0x18] sm:$0xf]
        %v359 = vld [vmem:[#allocation2 + $0x1c] sm:$0xf]
        %v360 = vld [vmem:[#allocation2 + $0x20] sm:$0xf]
        %v361 = vld [vmem:[#allocation2 + $0x24] sm:$0xf]
        %v362 = vld [vmem:[#allocation2 + $0x28] sm:$0xf]
        %v363 = vld [vmem:[#allocation2 + $0x2c] sm:$0xf]
        %v364 = vld [vmem:[%s3 + $0x1] sm:$0x1]
        %v365 = vlaneseq
        %v366 = vshrl.u32 %v365, 7
        %v367 = vsub.s32 0, %v366
        %v368 = vrot.slane %v364, %v367
        %v377 = vunpack.c.l.b16 %v356
        %v378 = vunpack.c.l.b16 %v357
        %v379 = vunpack.c.l.b16 %v358
        %v380 = vunpack.c.l.b16 %v359
        %v381 = vunpack.c.l.b16 %v360
        %v382 = vunpack.c.l.b16 %v361
        %v383 = vunpack.c.l.b16 %v362
        %v384 = vunpack.c.l.b16 %v363
        %v385 = vpack.c.b16 %v378, %v377
        %v386 = vpack.c.b16 %v380, %v379
        %v387 = vpack.c.b16 %v382, %v381
        %v388 = vpack.c.b16 %v384, %v383
        %vm393 = vcmask 523264
        %v394 = vsel %vm393, %v355, 0
        %396 = vmatprep.subr.bf16.mxu0 0
        %397 = vmatpush1.bf16.msra.mxu0 %v385
        %398 = vmatprep.subr.bf16.mxu0 0
        %399 = vmatpush1.bf16.msra.mxu0 %v386
        %400 = vmatprep.subr.bf16.mxu0 0
        %401 = vmatpush1.bf16.msra.mxu0 %v387
        %402 = vmatprep.subr.bf16.mxu0 0
        %403 = vmatpush1.bf16.msra.mxu0 %v388
        %404 = vmatprep.subr.bf16.mxu0 0
        %405 = vmatpush1.bf16.msra.mxu0 0
        %406 = vmatprep.subr.bf16.mxu0 0
        %407 = vmatpush1.bf16.msra.mxu0 0
        %408 = vmatprep.subr.bf16.mxu0 0
        %409 = vmatpush1.bf16.msra.mxu0 0
        %410 = vmatprep.subr.bf16.mxu0 0
        %411 = vmatpush1.bf16.msra.mxu0 0
        %412 = vmatprep.subr.bf16.mxu0 0
        %413 = vmatpush1.bf16.msra.mxu0 0
        %414 = vmatprep.subr.bf16.mxu0 0
        %415 = vmatpush1.bf16.msra.mxu0 0
        %416 = vmatprep.subr.bf16.mxu0 0
        %417 = vmatpush1.bf16.msra.mxu0 0
        %418 = vmatprep.subr.bf16.mxu0 0
        %419 = vmatpush1.bf16.msra.mxu0 0
        %420 = vmatprep.subr.bf16.mxu0 0
        %421 = vmatpush1.bf16.msra.mxu0 0
        %422 = vmatprep.subr.bf16.mxu0 0
        %423 = vmatpush1.bf16.msra.mxu0 0
        %424 = vmatprep.subr.bf16.mxu0 0
        %425 = vmatpush1.bf16.msra.mxu0 0
        %426 = vmatprep.subr.bf16.mxu0 0
        %427 = vmatpush1.bf16.msra.mxu0 0
        %428 = vmatprep.mubr.bf16.mxu0 0
        %429 = vmatmul.mubr.bf16.gmra.mrb[0].mxu0 %v394
        %v430 = vpop.f32.mrb[0].mxu0
        %v431 = vadd.f32 %v368, %v430
        %v432 = vpop.f32.mrb[0].mxu0
        %v433 = vpop.f32.mrb[0].mxu0
        %v434 = vpop.f32.mrb[0].mxu0
        %435 = vdwg.mxu0
        %v436 = vmax.f32 %v431, 0.0
        %v437 = vpack.c.bf16 %v436, %v436
        %v438 = vld [vmem:[#allocation2 + $0x30] sm:$0xf]
        %v439 = vld [vmem:[#allocation2 + $0x34] sm:$0xf]
        %v440 = vld [vmem:[#allocation2 + $0x38] sm:$0xf]
        %v441 = vld [vmem:[#allocation2 + $0x3c] sm:$0xf]
        %v442 = vld [vmem:[#allocation2 + $0x40] sm:$0xf]
        %v443 = vld [vmem:[#allocation2 + $0x44] sm:$0xf]
        %v444 = vld [vmem:[#allocation2 + $0x48] sm:$0xf]
        %v445 = vld [vmem:[#allocation2 + $0x4c] sm:$0xf]
        %v446 = vld [vmem:[#allocation2 + $0x50] sm:$0xf]
        %v447 = vld [vmem:[#allocation2 + $0x54] sm:$0xf]
        %v448 = vld [vmem:[#allocation2 + $0x58] sm:$0xf]
        %v449 = vld [vmem:[#allocation2 + $0x5c] sm:$0xf]
        %v450 = vld [vmem:[%s3 + $0x2] sm:$0x1]
        %v451 = vlaneseq
        %v452 = vshrl.u32 %v451, 7
        %v453 = vsub.s32 0, %v452
        %v454 = vrot.slane %v450, %v453
        %v467 = vunpack.c.l.b16 %v438
        %v468 = vunpack.c.l.b16 %v439
        %v469 = vunpack.c.l.b16 %v440
        %v470 = vunpack.c.l.b16 %v441
        %v471 = vunpack.c.l.b16 %v442
        %v472 = vunpack.c.l.b16 %v443
        %v473 = vunpack.c.l.b16 %v444
        %v474 = vunpack.c.l.b16 %v445
        %v475 = vunpack.c.l.b16 %v446
        %v476 = vunpack.c.l.b16 %v447
        %v477 = vunpack.c.l.b16 %v448
        %v478 = vunpack.c.l.b16 %v449
        %v479 = vpack.c.b16 %v468, %v467
        %v480 = vpack.c.b16 %v470, %v469
        %v481 = vpack.c.b16 %v472, %v471
        %v482 = vpack.c.b16 %v474, %v473
        %v483 = vpack.c.b16 %v476, %v475
        %v484 = vpack.c.b16 %v478, %v477
        %vm491 = vcmask 785408
        %v493 = vsel %vm491, %v437, 0
        %495 = vmatprep.subr.bf16.mxu0 0
        %496 = vmatpush1.bf16.msra.mxu0 %v479
        %497 = vmatprep.subr.bf16.mxu0 0
        %498 = vmatpush1.bf16.msra.mxu0 %v480
        %499 = vmatprep.subr.bf16.mxu0 0
        %500 = vmatpush1.bf16.msra.mxu0 %v481
        %501 = vmatprep.subr.bf16.mxu0 0
        %502 = vmatpush1.bf16.msra.mxu0 %v482
        %503 = vmatprep.subr.bf16.mxu0 0
        %504 = vmatpush1.bf16.msra.mxu0 %v483
        %505 = vmatprep.subr.bf16.mxu0 0
        %506 = vmatpush1.bf16.msra.mxu0 %v484
        %507 = vmatprep.subr.bf16.mxu0 0
        %508 = vmatpush1.bf16.msra.mxu0 0
        %509 = vmatprep.subr.bf16.mxu0 0
        %510 = vmatpush1.bf16.msra.mxu0 0
        %511 = vmatprep.subr.bf16.mxu0 0
        %512 = vmatpush1.bf16.msra.mxu0 0
        %513 = vmatprep.subr.bf16.mxu0 0
        %514 = vmatpush1.bf16.msra.mxu0 0
        %515 = vmatprep.subr.bf16.mxu0 0
        %516 = vmatpush1.bf16.msra.mxu0 0
        %517 = vmatprep.subr.bf16.mxu0 0
        %518 = vmatpush1.bf16.msra.mxu0 0
        %519 = vmatprep.subr.bf16.mxu0 0
        %520 = vmatpush1.bf16.msra.mxu0 0
        %521 = vmatprep.subr.bf16.mxu0 0
        %522 = vmatpush1.bf16.msra.mxu0 0
        %523 = vmatprep.subr.bf16.mxu0 0
        %524 = vmatpush1.bf16.msra.mxu0 0
        %525 = vmatprep.subr.bf16.mxu0 0
        %526 = vmatpush1.bf16.msra.mxu0 0
        %527 = vmatprep.mubr.bf16.mxu0 0
        %528 = vmatmul.mubr.bf16.gmra.mrb[0].mxu0 %v493
        %v529 = vpop.f32.mrb[0].mxu0
        %v530 = vadd.f32 %v454, %v529
        %v531 = vpop.f32.mrb[0].mxu0
        %v532 = vpop.f32.mrb[0].mxu0
        %v533 = vpop.f32.mrb[0].mxu0
        %534 = vdwg.mxu0
        %v535 = vmax.f32 %v530, 0.0
        %v536 = vld [vmem:[%s3 + $0x6] sm:$0x1]
        %v537 = vlaneseq
        %v538 = vshrl.u32 %v537, 7
        %v539 = vsub.s32 0, %v538
        %v540 = vrot.slane %v536, %v539
        %v541 = vadd.f32 %v343, %v540
        %vm542 = vcmask 23552
        %v543 = vsel %vm542, %v541, -inf
        %544 = vmax.xlane.f32.xlu0 %v543
        %v545 = vpop.xlane.xlu0 %544
        %v546 = vsub.f32 %v541, %v545
        %v547 = vmul.f32 %v546, 1.442695
        %v548 = vpow.pop %v547
        %v549 = vsel %vm542, %v548, 0.0
        %550 = vadd.xlane.f32.xlu0 %v549
        %v551 = vpop.xlane.xlu0 %550
        %v552 = vrcp.pop %v551
        %v553 = vmul.f32 %v548, %v552
        %vm554 = vcmask 39960
        %v555 = vsel %vm554, %v541, -inf
        %556 = vmax.xlane.f32.xlu0 %v555
        %v557 = vpop.xlane.xlu0 %556
        %v558 = vsub.f32 %v541, %v557
        %v559 = vmul.f32 %v558, 1.442695
        %v560 = vpow.pop %v559
        %562 = vrot.lane.b32.xlu0 %v560, 125
        %v563 = vpop.permute.xlu0 %562
        %vm565 = vcmask 15360
        %v566 = vsel %vm565, %v563, 0.0
        %567 = vadd.xlane.f32.xlu0 %v566
        %v568 = vpop.xlane.xlu0 %567
        %v569 = vrcp.pop %v568
        %v570 = vmul.f32 %v560, %v569
        %572 = vset.pattern.permute.xlu0 0
        %573 = vperm.xlu0 %572, %v553
        %v574 = vpop.permute.xlu0 %573
        %v576 = vmul.f32 %v574, %v535
        %577 = vset.pattern.permute.xlu0 1
        %578 = vperm.xlu0 %577, %v553
        %v579 = vpop.permute.xlu0 %578
        %v581 = vmul.f32 %v579, %v535
        %583 = vrot.lane.b32.xlu0 %v581, 112
        %v584 = vpop.permute.xlu0 %583
        %v586 = vadd.f32 %v576, %v584
        %587 = vset.pattern.permute.xlu0 2
        %588 = vperm.xlu0 %587, %v553
        %v589 = vpop.permute.xlu0 %588
        %v591 = vmul.f32 %v589, %v535
        %593 = vrot.lane.b32.xlu0 %v591, 96
        %v594 = vpop.permute.xlu0 %593
        %v596 = vadd.f32 %v586, %v594
        %v597 = vpack.c.bf16 %v596, %v596
        %v598 = vld [vmem:[#allocation2 + $0x60] sm:$0xf]
        %v599 = vld [vmem:[#allocation2 + $0x64] sm:$0xf]
        %v600 = vld [vmem:[%s3 + $0x3] sm:$0x1]
        %v601 = vlaneseq
        %v602 = vshrl.u32 %v601, 7
        %v603 = vsub.s32 0, %v602
        %v604 = vrot.slane %v600, %v603
        %v607 = vunpack.c.l.b16 %v598
        %v608 = vunpack.c.l.b16 %v599
        %v609 = vpack.c.b16 %v608, %v607
        %v612 = vsel %vm304, %v597, 0
        %614 = vmatprep.subr.bf16.mxu0 0
        %615 = vmatpush1.bf16.msra.mxu0 %v609
        %616 = vmatprep.subr.bf16.mxu0 0
        %617 = vmatpush1.bf16.msra.mxu0 0
        %618 = vmatprep.subr.bf16.mxu0 0
        %619 = vmatpush1.bf16.msra.mxu0 0
        %620 = vmatprep.subr.bf16.mxu0 0
        %621 = vmatpush1.bf16.msra.mxu0 0
        %622 = vmatprep.subr.bf16.mxu0 0
        %623 = vmatpush1.bf16.msra.mxu0 0
        %624 = vmatprep.subr.bf16.mxu0 0
        %625 = vmatpush1.bf16.msra.mxu0 0
        %626 = vmatprep.subr.bf16.mxu0 0
        %627 = vmatpush1.bf16.msra.mxu0 0
        %628 = vmatprep.subr.bf16.mxu0 0
        %629 = vmatpush1.bf16.msra.mxu0 0
        %630 = vmatprep.subr.bf16.mxu0 0
        %631 = vmatpush1.bf16.msra.mxu0 0
        %632 = vmatprep.subr.bf16.mxu0 0
        %633 = vmatpush1.bf16.msra.mxu0 0
        %634 = vmatprep.subr.bf16.mxu0 0
        %635 = vmatpush1.bf16.msra.mxu0 0
        %636 = vmatprep.subr.bf16.mxu0 0
        %637 = vmatpush1.bf16.msra.mxu0 0
        %638 = vmatprep.subr.bf16.mxu0 0
        %639 = vmatpush1.bf16.msra.mxu0 0
        %640 = vmatprep.subr.bf16.mxu0 0
        %641 = vmatpush1.bf16.msra.mxu0 0
        %642 = vmatprep.subr.bf16.mxu0 0
        %643 = vmatpush1.bf16.msra.mxu0 0
        %644 = vmatprep.subr.bf16.mxu0 0
        %645 = vmatpush1.bf16.msra.mxu0 0
        %646 = vmatprep.mubr.bf16.mxu0 0
        %647 = vmatmul.mubr.bf16.gmra.mrb[0].mxu0 %v612
        %v648 = vpop.f32.mrb[0].mxu0
        %v649 = vadd.f32 %v604, %v648
        %v650 = vpop.f32.mrb[0].mxu0
        %v651 = vpop.f32.mrb[0].mxu0
        %v652 = vpop.f32.mrb[0].mxu0
        %653 = vdwg.mxu0
        %v654 = vmax.f32 %v649, 0.0
        %v655 = vpack.c.bf16 %v654, %v654
        %v656 = vld [vmem:[#allocation2 + $0x68] sm:$0xf]
        %v657 = vld [vmem:[#allocation2 + $0x6c] sm:$0xf]
        %v658 = vld [vmem:[#allocation2 + $0x70] sm:$0xf]
        %v659 = vld [vmem:[#allocation2 + $0x74] sm:$0xf]
        %v660 = vld [vmem:[%s3 + $0x4] sm:$0x1]
        %v661 = vlaneseq
        %v662 = vshrl.u32 %v661, 7
        %v663 = vsub.s32 0, %v662
        %v664 = vrot.slane %v660, %v663
        %v669 = vunpack.c.l.b16 %v656
        %v670 = vunpack.c.l.b16 %v657
        %v671 = vunpack.c.l.b16 %v658
        %v672 = vunpack.c.l.b16 %v659
        %v673 = vpack.c.b16 %v670, %v669
        %v674 = vpack.c.b16 %v672, %v671
        %vm677 = vcmask 261120
        %v679 = vsel %vm677, %v655, 0
        %681 = vmatprep.subr.bf16.mxu0 0
        %682 = vmatpush1.bf16.msra.mxu0 %v673
        %683 = vmatprep.subr.bf16.mxu0 0
        %684 = vmatpush1.bf16.msra.mxu0 %v674
        %685 = vmatprep.subr.bf16.mxu0 0
        %686 = vmatpush1.bf16.msra.mxu0 0
        %687 = vmatprep.subr.bf16.mxu0 0
        %688 = vmatpush1.bf16.msra.mxu0 0
        %689 = vmatprep.subr.bf16.mxu0 0
        %690 = vmatpush1.bf16.msra.mxu0 0
        %691 = vmatprep.subr.bf16.mxu0 0
        %692 = vmatpush1.bf16.msra.mxu0 0
        %693 = vmatprep.subr.bf16.mxu0 0
        %694 = vmatpush1.bf16.msra.mxu0 0
        %695 = vmatprep.subr.bf16.mxu0 0
        %696 = vmatpush1.bf16.msra.mxu0 0
        %697 = vmatprep.subr.bf16.mxu0 0
        %698 = vmatpush1.bf16.msra.mxu0 0
        %699 = vmatprep.subr.bf16.mxu0 0
        %700 = vmatpush1.bf16.msra.mxu0 0
        %701 = vmatprep.subr.bf16.mxu0 0
        %702 = vmatpush1.bf16.msra.mxu0 0
        %703 = vmatprep.subr.bf16.mxu0 0
        %704 = vmatpush1.bf16.msra.mxu0 0
        %705 = vmatprep.subr.bf16.mxu0 0
        %706 = vmatpush1.bf16.msra.mxu0 0
        %707 = vmatprep.subr.bf16.mxu0 0
        %708 = vmatpush1.bf16.msra.mxu0 0
        %709 = vmatprep.subr.bf16.mxu0 0
        %710 = vmatpush1.bf16.msra.mxu0 0
        %711 = vmatprep.subr.bf16.mxu0 0
        %712 = vmatpush1.bf16.msra.mxu0 0
        %713 = vmatprep.mubr.bf16.mxu0 0
        %714 = vmatmul.mubr.bf16.gmra.mrb[0].mxu0 %v679
        %v715 = vpop.f32.mrb[0].mxu0
        %v716 = vadd.f32 %v664, %v715
        %v717 = vpop.f32.mrb[0].mxu0
        %v718 = vpop.f32.mrb[0].mxu0
        %v719 = vpop.f32.mrb[0].mxu0
        %720 = vdwg.mxu0
        %v721 = vmax.f32 %v716, 0.0
        %v722 = vpack.c.bf16 %v721, %v721
        %v723 = vld [vmem:[#allocation2 + $0x78] sm:$0xf]
        %v724 = vld [vmem:[#allocation2 + $0x7c] sm:$0xf]
        %v725 = vld [vmem:[%s3 + $0x5] sm:$0x1]
        %v726 = vlaneseq
        %v727 = vshrl.u32 %v726, 7
        %v728 = vsub.s32 0, %v727
        %v729 = vrot.slane %v725, %v728
        %v732 = vunpack.c.l.b16 %v723
        %v733 = vunpack.c.l.b16 %v724
        %v734 = vpack.c.b16 %v733, %v732
        %v737 = vsel %vm304, %v722, 0
        %739 = vmatprep.subr.bf16.mxu0 0
        %740 = vmatpush1.bf16.msra.mxu0 %v734
        %741 = vmatprep.subr.bf16.mxu0 0
        %742 = vmatpush1.bf16.msra.mxu0 0
        %743 = vmatprep.subr.bf16.mxu0 0
        %744 = vmatpush1.bf16.msra.mxu0 0
        %745 = vmatprep.subr.bf16.mxu0 0
        %746 = vmatpush1.bf16.msra.mxu0 0
        %747 = vmatprep.subr.bf16.mxu0 0
        %748 = vmatpush1.bf16.msra.mxu0 0
        %749 = vmatprep.subr.bf16.mxu0 0
        %750 = vmatpush1.bf16.msra.mxu0 0
        %751 = vmatprep.subr.bf16.mxu0 0
        %752 = vmatpush1.bf16.msra.mxu0 0
        %753 = vmatprep.subr.bf16.mxu0 0
        %754 = vmatpush1.bf16.msra.mxu0 0
        %755 = vmatprep.subr.bf16.mxu0 0
        %756 = vmatpush1.bf16.msra.mxu0 0
        %757 = vmatprep.subr.bf16.mxu0 0
        %758 = vmatpush1.bf16.msra.mxu0 0
        %759 = vmatprep.subr.bf16.mxu0 0
        %760 = vmatpush1.bf16.msra.mxu0 0
        %761 = vmatprep.subr.bf16.mxu0 0
        %762 = vmatpush1.bf16.msra.mxu0 0
        %763 = vmatprep.subr.bf16.mxu0 0
        %764 = vmatpush1.bf16.msra.mxu0 0
        %765 = vmatprep.subr.bf16.mxu0 0
        %766 = vmatpush1.bf16.msra.mxu0 0
        %767 = vmatprep.subr.bf16.mxu0 0
        %768 = vmatpush1.bf16.msra.mxu0 0
        %769 = vmatprep.subr.bf16.mxu0 0
        %770 = vmatpush1.bf16.msra.mxu0 0
        %771 = vmatprep.mubr.bf16.mxu0 0
        %772 = vmatmul.mubr.bf16.gmra.mrb[0].mxu0 %v737
        %v773 = vpop.f32.mrb[0].mxu0
        %v774 = vadd.f32 %v729, %v773
        %v775 = vpop.f32.mrb[0].mxu0
        %v776 = vpop.f32.mrb[0].mxu0
        %v777 = vpop.f32.mrb[0].mxu0
        %778 = vdwg.mxu0
        %v779 = vxor.u32 %v774, 2147483648
        %v780 = vmul.f32 %v779, 1.442695
        %v781 = vpow.pop %v780
        %v782 = vadd.f32 %v781, 1.0
        %v783 = vrcp.pop %v782
        %v784 = vmul.f32 1.0, %v783
        %786 = vrot.lane.b32.xlu0 %v784, 3
        %v787 = vpop.permute.xlu0 %786
        %v789 = vmul.f32 %v570, %v787
        %791 = vrot.lane.b32.xlu0 %v789, 125
        %v792 = vpop.permute.xlu0 %791
        %v794 = vsel %vm565, %v792, 0.0
        %795 = vadd.xlane.f32.xlu0 %v794
        %v796 = vpop.xlane.xlu0 %795
        %v797 = vrcp.pop 2.0
        %v798 = vmul.f32 %v796, %v797
        %v799 = vld [vmem:[%s3 + $0x7] sm:$0x1]
        %v800 = vlaneseq
        %v801 = vshrl.u32 %v800, 7
        %v802 = vsub.s32 0, %v801
        %v803 = vrot.slane %v799, %v802
        %v804 = vadd.f32 %v343, %v803
        %v805 = vsel %vm542, %v804, -inf
        %806 = vmax.xlane.f32.xlu0 %v805
        %v807 = vpop.xlane.xlu0 %806
        %v808 = vsub.f32 %v804, %v807
        %v809 = vmul.f32 %v808, 1.442695
        %v810 = vpow.pop %v809
        %v811 = vsel %vm542, %v810, 0.0
        %812 = vadd.xlane.f32.xlu0 %v811
        %v813 = vpop.xlane.xlu0 %812
        %v814 = vrcp.pop %v813
        %v815 = vmul.f32 %v810, %v814
        %v816 = vsel %vm554, %v804, -inf
        %817 = vmax.xlane.f32.xlu0 %v816
        %v818 = vpop.xlane.xlu0 %817
        %v819 = vsub.f32 %v804, %v818
        %v820 = vmul.f32 %v819, 1.442695
        %v821 = vpow.pop %v820
        %823 = vrot.lane.b32.xlu0 %v821, 125
        %v824 = vpop.permute.xlu0 %823
        %v826 = vsel %vm565, %v824, 0.0
        %827 = vadd.xlane.f32.xlu0 %v826
        %v828 = vpop.xlane.xlu0 %827
        %v829 = vrcp.pop %v828
        %v830 = vmul.f32 %v821, %v829
        %832 = vset.pattern.permute.xlu0 0
        %833 = vperm.xlu0 %832, %v815
        %v834 = vpop.permute.xlu0 %833
        %v836 = vmul.f32 %v834, %v535
        %837 = vset.pattern.permute.xlu0 1
        %838 = vperm.xlu0 %837, %v815
        %v839 = vpop.permute.xlu0 %838
        %v841 = vmul.f32 %v839, %v535
        %843 = vrot.lane.b32.xlu0 %v841, 112
        %v844 = vpop.permute.xlu0 %843
        %v846 = vadd.f32 %v836, %v844
        %847 = vset.pattern.permute.xlu0 2
        %848 = vperm.xlu0 %847, %v815
        %v849 = vpop.permute.xlu0 %848
        %v851 = vmul.f32 %v849, %v535
        %853 = vrot.lane.b32.xlu0 %v851, 96
        %v854 = vpop.permute.xlu0 %853
        %v856 = vadd.f32 %v846, %v854
        %v857 = vpack.c.bf16 %v856, %v856
        %v859 = vsel %vm304, %v857, 0
        %861 = vmatprep.subr.bf16.mxu0 0
        %862 = vmatpush1.bf16.msra.mxu0 %v609
        %863 = vmatprep.subr.bf16.mxu0 0
        %864 = vmatpush1.bf16.msra.mxu0 0
        %865 = vmatprep.subr.bf16.mxu0 0
        %866 = vmatpush1.bf16.msra.mxu0 0
        %867 = vmatprep.subr.bf16.mxu0 0
        %868 = vmatpush1.bf16.msra.mxu0 0
        %869 = vmatprep.subr.bf16.mxu0 0
        %870 = vmatpush1.bf16.msra.mxu0 0
        %871 = vmatprep.subr.bf16.mxu0 0
        %872 = vmatpush1.bf16.msra.mxu0 0
        %873 = vmatprep.subr.bf16.mxu0 0
        %874 = vmatpush1.bf16.msra.mxu0 0
        %875 = vmatprep.subr.bf16.mxu0 0
        %876 = vmatpush1.bf16.msra.mxu0 0
        %877 = vmatprep.subr.bf16.mxu0 0
        %878 = vmatpush1.bf16.msra.mxu0 0
        %879 = vmatprep.subr.bf16.mxu0 0
        %880 = vmatpush1.bf16.msra.mxu0 0
        %881 = vmatprep.subr.bf16.mxu0 0
        %882 = vmatpush1.bf16.msra.mxu0 0
        %883 = vmatprep.subr.bf16.mxu0 0
        %884 = vmatpush1.bf16.msra.mxu0 0
        %885 = vmatprep.subr.bf16.mxu0 0
        %886 = vmatpush1.bf16.msra.mxu0 0
        %887 = vmatprep.subr.bf16.mxu0 0
        %888 = vmatpush1.bf16.msra.mxu0 0
        %889 = vmatprep.subr.bf16.mxu0 0
        %890 = vmatpush1.bf16.msra.mxu0 0
        %891 = vmatprep.subr.bf16.mxu0 0
        %892 = vmatpush1.bf16.msra.mxu0 0
        %893 = vmatprep.mubr.bf16.mxu0 0
        %894 = vmatmul.mubr.bf16.gmra.mrb[0].mxu0 %v859
        %v895 = vpop.f32.mrb[0].mxu0
        %v896 = vadd.f32 %v604, %v895
        %v897 = vpop.f32.mrb[0].mxu0
        %v898 = vpop.f32.mrb[0].mxu0
        %v899 = vpop.f32.mrb[0].mxu0
        %900 = vdwg.mxu0
        %v901 = vmax.f32 %v896, 0.0
        %v902 = vpack.c.bf16 %v901, %v901
        %v904 = vsel %vm677, %v902, 0
        %906 = vmatprep.subr.bf16.mxu0 0
        %907 = vmatpush1.bf16.msra.mxu0 %v673
        %908 = vmatprep.subr.bf16.mxu0 0
        %909 = vmatpush1.bf16.msra.mxu0 %v674
        %910 = vmatprep.subr.bf16.mxu0 0
        %911 = vmatpush1.bf16.msra.mxu0 0
        %912 = vmatprep.subr.bf16.mxu0 0
        %913 = vmatpush1.bf16.msra.mxu0 0
        %914 = vmatprep.subr.bf16.mxu0 0
        %915 = vmatpush1.bf16.msra.mxu0 0
        %916 = vmatprep.subr.bf16.mxu0 0
        %917 = vmatpush1.bf16.msra.mxu0 0
        %918 = vmatprep.subr.bf16.mxu0 0
        %919 = vmatpush1.bf16.msra.mxu0 0
        %920 = vmatprep.subr.bf16.mxu0 0
        %921 = vmatpush1.bf16.msra.mxu0 0
        %922 = vmatprep.subr.bf16.mxu0 0
        %923 = vmatpush1.bf16.msra.mxu0 0
        %924 = vmatprep.subr.bf16.mxu0 0
        %925 = vmatpush1.bf16.msra.mxu0 0
        %926 = vmatprep.subr.bf16.mxu0 0
        %927 = vmatpush1.bf16.msra.mxu0 0
        %928 = vmatprep.subr.bf16.mxu0 0
        %929 = vmatpush1.bf16.msra.mxu0 0
        %930 = vmatprep.subr.bf16.mxu0 0
        %931 = vmatpush1.bf16.msra.mxu0 0
        %932 = vmatprep.subr.bf16.mxu0 0
        %933 = vmatpush1.bf16.msra.mxu0 0
        %934 = vmatprep.subr.bf16.mxu0 0
        %935 = vmatpush1.bf16.msra.mxu0 0
        %936 = vmatprep.subr.bf16.mxu0 0
        %937 = vmatpush1.bf16.msra.mxu0 0
        %938 = vmatprep.mubr.bf16.mxu0 0
        %939 = vmatmul.mubr.bf16.gmra.mrb[0].mxu0 %v904
        %v940 = vpop.f32.mrb[0].mxu0
        %v941 = vadd.f32 %v664, %v940
        %v942 = vpop.f32.mrb[0].mxu0
        %v943 = vpop.f32.mrb[0].mxu0
        %v944 = vpop.f32.mrb[0].mxu0
        %945 = vdwg.mxu0
        %v946 = vmax.f32 %v941, 0.0
        %v947 = vpack.c.bf16 %v946, %v946
        %v949 = vsel %vm304, %v947, 0
        %951 = vmatprep.subr.bf16.mxu0 0
        %952 = vmatpush1.bf16.msra.mxu0 %v734
        %953 = vmatprep.subr.bf16.mxu0 0
        %954 = vmatpush1.bf16.msra.mxu0 0
        %955 = vmatprep.subr.bf16.mxu0 0
        %956 = vmatpush1.bf16.msra.mxu0 0
        %957 = vmatprep.subr.bf16.mxu0 0
        %958 = vmatpush1.bf16.msra.mxu0 0
        %959 = vmatprep.subr.bf16.mxu0 0
        %960 = vmatpush1.bf16.msra.mxu0 0
        %961 = vmatprep.subr.bf16.mxu0 0
        %962 = vmatpush1.bf16.msra.mxu0 0
        %963 = vmatprep.subr.bf16.mxu0 0
        %964 = vmatpush1.bf16.msra.mxu0 0
        %965 = vmatprep.subr.bf16.mxu0 0
        %966 = vmatpush1.bf16.msra.mxu0 0
        %967 = vmatprep.subr.bf16.mxu0 0
        %968 = vmatpush1.bf16.msra.mxu0 0
        %969 = vmatprep.subr.bf16.mxu0 0
        %970 = vmatpush1.bf16.msra.mxu0 0
        %971 = vmatprep.subr.bf16.mxu0 0
        %972 = vmatpush1.bf16.msra.mxu0 0
        %973 = vmatprep.subr.bf16.mxu0 0
        %974 = vmatpush1.bf16.msra.mxu0 0
        %975 = vmatprep.subr.bf16.mxu0 0
        %976 = vmatpush1.bf16.msra.mxu0 0
        %977 = vmatprep.subr.bf16.mxu0 0
        %978 = vmatpush1.bf16.msra.mxu0 0
        %979 = vmatprep.subr.bf16.mxu0 0
        %980 = vmatpush1.bf16.msra.mxu0 0
        %981 = vmatprep.subr.bf16.mxu0 0
        %982 = vmatpush1.bf16.msra.mxu0 0
        %983 = vmatprep.mubr.bf16.mxu0 0
        %984 = vmatmul.mubr.bf16.gmra.mrb[0].mxu0 %v949
        %v985 = vpop.f32.mrb[0].mxu0
        %v986 = vadd.f32 %v729, %v985
        %v987 = vpop.f32.mrb[0].mxu0
        %v988 = vpop.f32.mrb[0].mxu0
        %v989 = vpop.f32.mrb[0].mxu0
        %990 = vdwg.mxu0
        %v991 = vxor.u32 %v986, 2147483648
        %v992 = vmul.f32 %v991, 1.442695
        %v993 = vpow.pop %v992
        %v994 = vadd.f32 %v993, 1.0
        %v995 = vrcp.pop %v994
        %v996 = vmul.f32 1.0, %v995
        %998 = vrot.lane.b32.xlu0 %v996, 3
        %v999 = vpop.permute.xlu0 %998
        %v1001 = vmul.f32 %v830, %v999
        %1003 = vrot.lane.b32.xlu0 %v1001, 125
        %v1004 = vpop.permute.xlu0 %1003
        %v1006 = vsel %vm565, %v1004, 0.0
        %1007 = vadd.xlane.f32.xlu0 %v1006
        %v1008 = vpop.xlane.xlu0 %1007
        %v1009 = vmul.f32 %v1008, %v797
        %vm1010 = vcmask 7168
        %v1011 = vsel %vm1010, %v798, %v1009
        %1012 = vst.msk [vmem:[%s224] sm:$0xff] %vm565, %v1011
        %p1013 = scmp.lt.s32.totalorder %s16, 1
        %s1014 = scalar_select %p1013, %s16, 1
        %s1015 = smul.addr %s1014, 8
        %s1016 = scalar_lea.vmem %s4, %s1015
        // Predicated region
        $region41: #{tpu_custom_call.1} parent=35 // pred_check
          %p1017 = pneg %p128
        $region42: #{tpu_custom_call.1} parent=35 // pred_check_branch
          %1019 = sbr.rel (%p1017) target = $region44
        $region43: #{tpu_custom_call.1} parent=35 // pred_region
          _
        $region44: #{tpu_custom_call.1} parent=35 // pred_fallthru
          _
      $region36: #{tpu_custom_call.1} parent=5 // pred_fallthru
        _
      %p1020 = scmp.le.s32.totalorder 2, %s11
      // Predicated region
      $region45: #{tpu_custom_call.1} parent=5 // pred_check
        %p1021 = pneg %p1020
      $region46: #{tpu_custom_call.1} parent=5 // pred_check_branch
        %1023 = sbr.rel (%p1021) target = $region48
      $region47: #{tpu_custom_call.1} parent=5 // pred_region
        %s1024 = ssub.s32 %s11, 2
        // Predicated region
        $region49: #{tpu_custom_call.1} parent=47 // pred_check
          %p1025 = pneg %p134
        $region50: #{tpu_custom_call.1} parent=47 // pred_check_branch
          %1027 = sbr.rel (%p1025) target = $region52
        $region51: #{tpu_custom_call.1} parent=47 // pred_region
          %p1028 = scmp.lt.s32.totalorder %s17, 1
          %s1029 = scalar_select %p1028, %s17, 1
          %s1030 = smul.addr %s1029, 8
          %s1031 = scalar_lea.vmem %s4, %s1030
        $region52: #{tpu_custom_call.1} parent=47 // pred_fallthru
          _
      $region48: #{tpu_custom_call.1} parent=5 // pred_fallthru
        _
    $region6: #{tpu_custom_call.1} parent=1 // loop_footer
      %s15 = sadd.s32 1, %s11
    $region7: #{tpu_custom_call.1} parent=1 // loop_footer_branch
      %10 = sbr.rel target = $region3
    $region8: #{tpu_custom_call.1} parent=1 // loop_exit
      _
    %1032 = vsyncpa [#allocation3], 1
    %s1033 = scalar_lea.sflag [#allocation3], 1
    %1034 = vsyncpa %s1033, 1

</llo_original>
